<compile_context>
chip_gen: v7x
topology: tpu7x:2x2x1
jax: 0.10.0
libtpu: 0.0.40
codegen_flags: <defaults>
</compile_context>

<pallas_src>
import jax
import jax.numpy as jnp
import numpy as np
from jax.experimental import pallas as pl
from jax.experimental.pallas import tpu as pltpu

K = 7  # kernel_size of all three Conv1d layers


def cnn1d_kernel(p1_ref, pm_ref,
                 w1_ref, b1_ref, w2_ref, b2_ref, w3_ref, b3_ref,
                 fw1_ref, fb1_ref, fw2_ref, fb2_ref, fw3_ref, fb3_ref,
                 out_ref):
    """Whole forward pass, batch folded into the row (M) dimension of every matmul.

    p1_ref : (R1, K*C_in)  bf16  im2col patches for conv1 (built in the wrapper)
    pm_ref : (B, R3)       f32   per-sample averaging matrix for the global pool
    w*_ref : (K*C, C_out)  bf16  conv weights (tap-major rows, lane-padded C_out)
    fw*_ref: (in, out)     bf16  FC weights (lane-padded where needed)
    b*/fb* : (1, C)        f32   biases (zero-padded)
    out_ref: (B, 128)      f32   lane-dense output slab; column 0 is the answer
    """

    def conv_tail(h_bf16, w_ref, b_ref):
        # h_bf16: (R_in, C) bf16 flat activation (batch stride preserved in rows).
        # One (R_out, K*C) @ (K*C, C_out) MXU matmul per layer (im2col).
        # Lane concat is 128-aligned; slices are plain sublane shifts.
        r_out = h_bf16.shape[0] - (K - 1)
        patches = jnp.concatenate(
            [h_bf16[t:t + r_out, :] for t in range(K)], axis=-1)
        acc = jnp.dot(patches, w_ref[...], preferred_element_type=jnp.float32)
        return jnp.maximum(acc + b_ref[...], 0.0)

    # conv1: contraction K*C_in = 28 -> a single matmul.
    h1 = jnp.maximum(
        jnp.dot(p1_ref[...], w1_ref[...], preferred_element_type=jnp.float32)
        + b1_ref[...], 0.0)                                    # (R1, 256) f32

    h2 = conv_tail(h1.astype(jnp.bfloat16), w2_ref, b2_ref)    # (R2, 128) [96 real]
    h3 = conv_tail(h2.astype(jnp.bfloat16), w3_ref, b3_ref)    # (R3, 128) [32 real]

    # Global average pool over each sample's valid rows, batched as one f32 matmul
    # (keeps the 1/L3 scaling exact; garbage boundary rows get weight 0).
    pooled = jnp.dot(pm_ref[...], h3, preferred_element_type=jnp.float32)  # (B, 128)

    # FC head, batched over the whole batch: 3 matmuls total.
    f = jnp.maximum(jnp.dot(pooled.astype(jnp.bfloat16), fw1_ref[...],
                            preferred_element_type=jnp.float32) + fb1_ref[...], 0.0)
    f = jnp.maximum(jnp.dot(f.astype(jnp.bfloat16), fw2_ref[...],
                            preferred_element_type=jnp.float32) + fb2_ref[...], 0.0)
    f = jnp.dot(f.astype(jnp.bfloat16), fw3_ref[...],
                preferred_element_type=jnp.float32) + fb3_ref[...]         # (B, 128)

    out_ref[...] = f.astype(out_ref.dtype)


@jax.jit
def cnn1d_forward(x, kparams):
    """x: (B, L, C_in) — same layout as the PyTorch forward() input (pre-permute)."""
    B, L, C_in = x.shape
    L3 = L - 3 * (K - 1)              # valid conv3 length per sample
    R1 = B * L - (K - 1)              # rows of conv1 output (flat, incl. garbage rows)
    R3 = B * L - 3 * (K - 1)          # rows of conv3 output (flat)

    # Wrapper-side im2col for conv1 (layout plumbing only; batch folded into rows).
    xf = x.reshape(B * L, C_in).astype(jnp.float32)
    p1 = jnp.concatenate([xf[t:t + R1, :] for t in range(K)],
                         axis=-1).astype(jnp.bfloat16)              # (R1, K*C_in)

    # (B, R3) averaging matrix: 1/L3 on each sample's valid conv3 rows, 0 elsewhere.
    rows = jnp.arange(R3)[None, :]
    rel = rows - jnp.arange(B)[:, None] * L
    pool_mat = jnp.where((rel >= 0) & (rel < L3),
                         jnp.float32(1.0 / L3), jnp.float32(0.0))    # (B, R3)

    vmem = pl.BlockSpec(memory_space=pltpu.MemorySpace.VMEM)
    out = pl.pallas_call(
        cnn1d_kernel,
        out_shape=jax.ShapeDtypeStruct((B, 128), jnp.float32),
        in_specs=[vmem] * (2 + len(kparams)),
        out_specs=vmem,
    )(p1, pool_mat, *kparams)

    # Column 0 of the lane-dense slab holds fc3's scalar output per sample.
    return jnp.squeeze(out[:, :1])    # matches PyTorch .squeeze() -> (B,)


def init_params(key, input_channels):
    """Deterministic synthetic init in native PyTorch layouts
    (Conv1d: (C_out, C_in, K);  Linear: (out, in);  biases: (out,))."""
    ks = jax.random.split(key, 12)

    def u(k, shape, fan_in):
        bound = 1.0 / np.sqrt(fan_in)
        return jax.random.uniform(k, shape, jnp.float32, -bound, bound)

    w1 = u(ks[0], (256, input_channels, K), input_channels * K)
    b1 = u(ks[1], (256,), input_channels * K)
    w2 = u(ks[2], (96, 256, K), 256 * K)
    b2 = u(ks[3], (96,), 256 * K)
    w3 = u(ks[4], (32, 96, K), 96 * K)
    b3 = u(ks[5], (32,), 96 * K)
    fw1 = u(ks[6], (64, 32), 32)
    fb1 = u(ks[7], (64,), 32)
    fw2 = u(ks[8], (128, 64), 64)
    fb2 = u(ks[9], (128,), 64)
    fw3 = u(ks[10], (1, 128), 128)
    fb3 = u(ks[11], (1,), 128)
    return (w1, b1, w2, b2, w3, b3, fw1, fb1, fw2, fb2, fw3, fb3)


def prepare_kernel_params(params):
    """PyTorch-layout f32 params -> kernel layout: im2col-reshaped, lane-padded,
    bf16 weights (halves weight DMA), f32 biases.  All padding is exact zeros."""
    (w1, b1, w2, b2, w3, b3, fw1, fb1, fw2, fb2, fw3, fb3) = params
    C2P = 128   # conv2 output channels padded 96 -> 128
    C3P = 128   # conv3 output channels padded 32 -> 128

    def conv_w(w, cin_pad=None, cout_pad=None):
        # (C_out, C_in, K) -> (K*C_in_pad, C_out_pad), tap-major rows (t*C_in + c).
        wk = jnp.transpose(w, (2, 1, 0))                                  # (K, C_in, C_out)
        if cin_pad is not None:
            wk = jnp.pad(wk, ((0, 0), (0, cin_pad - wk.shape[1]), (0, 0)))
        wk = wk.reshape(wk.shape[0] * wk.shape[1], wk.shape[2])
        if cout_pad is not None:
            wk = jnp.pad(wk, ((0, 0), (0, cout_pad - wk.shape[1])))
        return wk.astype(jnp.bfloat16)

    def pad_bias(b, n):
        return jnp.pad(b, (0, n - b.shape[0]))[None, :].astype(jnp.float32)

    W1 = conv_w(w1)                                 # (K*C_in, 256)
    B1 = b1[None, :].astype(jnp.float32)            # (1, 256)
    W2 = conv_w(w2, cout_pad=C2P)                   # (1792, 128)
    B2 = pad_bias(b2, C2P)                          # (1, 128)
    W3 = conv_w(w3, cin_pad=C2P, cout_pad=C3P)      # (896, 128)
    B3 = pad_bias(b3, C3P)                          # (1, 128)

    FW1 = jnp.pad(fw1.T, ((0, C3P - fw1.shape[1]), (0, 0))).astype(jnp.bfloat16)  # (128, 64)
    FB1 = fb1[None, :].astype(jnp.float32)                                        # (1, 64)
    FW2 = fw2.T.astype(jnp.bfloat16)                                              # (64, 128)
    FB2 = fb2[None, :].astype(jnp.float32)                                        # (1, 128)
    FW3 = jnp.pad(fw3.T, ((0, 0), (0, 128 - fw3.shape[0]))).astype(jnp.bfloat16)  # (128, 128)
    FB3 = jnp.pad(fb3, (0, 128 - fb3.shape[0]))[None, :].astype(jnp.float32)      # (1, 128)

    return (W1, B1, W2, B2, W3, B3, FW1, FB1, FW2, FB2, FW3, FB3)


def reference_forward(x, params):
    """Pure-JAX f32 mirror of the PyTorch module (semantics check)."""
    (w1, b1, w2, b2, w3, b3, fw1, fb1, fw2, fb2, fw3, fb3) = params

    def conv_relu(h, w, b):
        wio = jnp.transpose(w, (2, 1, 0))            # (K, C_in, C_out) = 'WIO'
        y = jax.lax.conv_general_dilated(
            h, wio, window_strides=(1,), padding='VALID',
            dimension_numbers=('NWC', 'WIO', 'NWC'))
        return jax.nn.relu(y + b[None, None, :])

    h = conv_relu(x.astype(jnp.float32), w1, b1)
    h = conv_relu(h, w2, b2)
    h = conv_relu(h, w3, b3)
    p = jnp.mean(h, axis=1)                          # AdaptiveAvgPool1d(1) + view
    f = jax.nn.relu(p @ fw1.T + fb1)
    f = jax.nn.relu(f @ fw2.T + fb2)
    f = f @ fw3.T + fb3
    return jnp.squeeze(f)


def reference_forward_bf16(x, params):
    """Mirrors the kernel's numerics (bf16 operands, f32 accumulation) with XLA convs."""
    (w1, b1, w2, b2, w3, b3, fw1, fb1, fw2, fb2, fw3, fb3) = params

    def conv_relu(h, w, b):
        wio = jnp.transpose(w, (2, 1, 0)).astype(jnp.bfloat16)
        y = jax.lax.conv_general_dilated(
            h.astype(jnp.bfloat16), wio, window_strides=(1,), padding='VALID',
            dimension_numbers=('NWC', 'WIO', 'NWC'),
            preferred_element_type=jnp.float32)
        return jax.nn.relu(y + b[None, None, :])

    def lin(a, w, b):
        return jnp.dot(a.astype(jnp.bfloat16), w.T.astype(jnp.bfloat16),
                       preferred_element_type=jnp.float32) + b

    h = conv_relu(x.astype(jnp.float32), w1, b1)
    h = conv_relu(h, w2, b2)
    h = conv_relu(h, w3, b3)
    p = jnp.mean(h, axis=1)
    f = jax.nn.relu(lin(p, fw1, fb1))
    f = jax.nn.relu(lin(f, fw2, fb2))
    f = lin(f, fw3, fb3)
    return jnp.squeeze(f)


if __name__ == "__main__":
    key = jax.random.PRNGKey(0)
    k_x, k_p = jax.random.split(key)

    B, L, C_IN = 2, 32, 4          # sequence must be > 18 to survive three k=7 convs
    x = jax.random.normal(k_x, (B, L, C_IN), dtype=jnp.float32)
    params = init_params(k_p, C_IN)
    kparams = prepare_kernel_params(params)

    y = jax.block_until_ready(cnn1d_forward(x, kparams))

    # Tight check against a reference that mirrors the kernel's bf16/f32 numerics.
    y_bf16 = reference_forward_bf16(x, params)
    np.testing.assert_allclose(np.asarray(y), np.asarray(y_bf16), rtol=2e-3, atol=2e-3)

    # Looser check against the pure-f32 PyTorch-equivalent module semantics.
    y_f32 = reference_forward(x, params)
    np.testing.assert_allclose(np.asarray(y), np.asarray(y_f32), rtol=3e-2, atol=3e-2)

    print("KERNEL_OK")
</pallas_src>

<mosaic_0001>
module attributes {stable_mosaic.version = 11 : i64} {
  func.func @cnn1d_kernel(%arg0: memref<58x28xbf16, #tpu.memory_space<vmem>>, %arg1: memref<2x46xf32, #tpu.memory_space<vmem>>, %arg2: memref<28x256xbf16, #tpu.memory_space<vmem>>, %arg3: memref<1x256xf32, #tpu.memory_space<vmem>>, %arg4: memref<1792x128xbf16, #tpu.memory_space<vmem>>, %arg5: memref<1x128xf32, #tpu.memory_space<vmem>>, %arg6: memref<896x128xbf16, #tpu.memory_space<vmem>>, %arg7: memref<1x128xf32, #tpu.memory_space<vmem>>, %arg8: memref<128x64xbf16, #tpu.memory_space<vmem>>, %arg9: memref<1x64xf32, #tpu.memory_space<vmem>>, %arg10: memref<64x128xbf16, #tpu.memory_space<vmem>>, %arg11: memref<1x128xf32, #tpu.memory_space<vmem>>, %arg12: memref<128x128xbf16, #tpu.memory_space<vmem>>, %arg13: memref<1x128xf32, #tpu.memory_space<vmem>>, %arg14: memref<2x128xf32, #tpu.memory_space<vmem>>) attributes {dimension_semantics = [], scalar_prefetch = 0 : i64, scratch_operands = 0 : i64, tpu.core_type = #tpu.core_type<tc>} {
    %c0 = arith.constant 0 : index
    %c0_0 = arith.constant 0 : index
    %0 = vector.load %arg0[%c0, %c0_0] : memref<58x28xbf16, #tpu.memory_space<vmem>>, vector<58x28xbf16>
    %c0_1 = arith.constant 0 : index
    %c0_2 = arith.constant 0 : index
    %1 = vector.load %arg2[%c0_1, %c0_2] : memref<28x256xbf16, #tpu.memory_space<vmem>>, vector<28x256xbf16>
    %cst = arith.constant dense<0.000000e+00> : vector<58x256xf32>
    %2 = tpu.matmul %0, %1, %cst {dimension_numbers = #tpu.dot_dimension_numbers<[1], [0], [0], [1], [0, 0, 1, 1], [], []>} : vector<58x28xbf16>, vector<28x256xbf16>, vector<58x256xf32> -> vector<58x256xf32>
    %c0_3 = arith.constant 0 : index
    %c0_4 = arith.constant 0 : index
    %3 = vector.load %arg3[%c0_3, %c0_4] : memref<1x256xf32, #tpu.memory_space<vmem>>, vector<1x256xf32>
    %4 = vector.broadcast %3 : vector<1x256xf32> to vector<58x256xf32>
    %5 = arith.addf %2, %4 : vector<58x256xf32>
    %cst_5 = arith.constant 0.000000e+00 : f32
    %6 = vector.broadcast %cst_5 : f32 to vector<58x256xf32>
    %7 = arith.maximumf %5, %6 : vector<58x256xf32>
    %8 = arith.truncf %7 : vector<58x256xf32> to vector<58x256xbf16>
    %9 = vector.extract_strided_slice %8 {offsets = [0, 0], sizes = [52, 256], strides = [1, 1]} : vector<58x256xbf16> to vector<52x256xbf16>
    %10 = vector.extract_strided_slice %8 {offsets = [1, 0], sizes = [52, 256], strides = [1, 1]} : vector<58x256xbf16> to vector<52x256xbf16>
    %11 = vector.extract_strided_slice %8 {offsets = [2, 0], sizes = [52, 256], strides = [1, 1]} : vector<58x256xbf16> to vector<52x256xbf16>
    %12 = vector.extract_strided_slice %8 {offsets = [3, 0], sizes = [52, 256], strides = [1, 1]} : vector<58x256xbf16> to vector<52x256xbf16>
    %13 = vector.extract_strided_slice %8 {offsets = [4, 0], sizes = [52, 256], strides = [1, 1]} : vector<58x256xbf16> to vector<52x256xbf16>
    %14 = vector.extract_strided_slice %8 {offsets = [5, 0], sizes = [52, 256], strides = [1, 1]} : vector<58x256xbf16> to vector<52x256xbf16>
    %15 = vector.extract_strided_slice %8 {offsets = [6, 0], sizes = [52, 256], strides = [1, 1]} : vector<58x256xbf16> to vector<52x256xbf16>
    %16 = tpu.concatenate %9, %10, %11, %12, %13, %14, %15 in 1 : vector<52x256xbf16>, vector<52x256xbf16>, vector<52x256xbf16>, vector<52x256xbf16>, vector<52x256xbf16>, vector<52x256xbf16>, vector<52x256xbf16> -> vector<52x1792xbf16>
    %c0_6 = arith.constant 0 : index
    %c0_7 = arith.constant 0 : index
    %17 = vector.load %arg4[%c0_6, %c0_7] : memref<1792x128xbf16, #tpu.memory_space<vmem>>, vector<1792x128xbf16>
    %cst_8 = arith.constant dense<0.000000e+00> : vector<52x128xf32>
    %18 = tpu.matmul %16, %17, %cst_8 {dimension_numbers = #tpu.dot_dimension_numbers<[1], [0], [0], [1], [0, 0, 1, 1], [], []>} : vector<52x1792xbf16>, vector<1792x128xbf16>, vector<52x128xf32> -> vector<52x128xf32>
    %c0_9 = arith.constant 0 : index
    %c0_10 = arith.constant 0 : index
    %19 = vector.load %arg5[%c0_9, %c0_10] : memref<1x128xf32, #tpu.memory_space<vmem>>, vector<1x128xf32>
    %20 = vector.broadcast %19 : vector<1x128xf32> to vector<52x128xf32>
    %21 = arith.addf %18, %20 : vector<52x128xf32>
    %cst_11 = arith.constant 0.000000e+00 : f32
    %22 = vector.broadcast %cst_11 : f32 to vector<52x128xf32>
    %23 = arith.maximumf %21, %22 : vector<52x128xf32>
    %24 = arith.truncf %23 : vector<52x128xf32> to vector<52x128xbf16>
    %25 = vector.extract_strided_slice %24 {offsets = [0, 0], sizes = [46, 128], strides = [1, 1]} : vector<52x128xbf16> to vector<46x128xbf16>
    %26 = vector.extract_strided_slice %24 {offsets = [1, 0], sizes = [46, 128], strides = [1, 1]} : vector<52x128xbf16> to vector<46x128xbf16>
    %27 = vector.extract_strided_slice %24 {offsets = [2, 0], sizes = [46, 128], strides = [1, 1]} : vector<52x128xbf16> to vector<46x128xbf16>
    %28 = vector.extract_strided_slice %24 {offsets = [3, 0], sizes = [46, 128], strides = [1, 1]} : vector<52x128xbf16> to vector<46x128xbf16>
    %29 = vector.extract_strided_slice %24 {offsets = [4, 0], sizes = [46, 128], strides = [1, 1]} : vector<52x128xbf16> to vector<46x128xbf16>
    %30 = vector.extract_strided_slice %24 {offsets = [5, 0], sizes = [46, 128], strides = [1, 1]} : vector<52x128xbf16> to vector<46x128xbf16>
    %31 = vector.extract_strided_slice %24 {offsets = [6, 0], sizes = [46, 128], strides = [1, 1]} : vector<52x128xbf16> to vector<46x128xbf16>
    %32 = tpu.concatenate %25, %26, %27, %28, %29, %30, %31 in 1 : vector<46x128xbf16>, vector<46x128xbf16>, vector<46x128xbf16>, vector<46x128xbf16>, vector<46x128xbf16>, vector<46x128xbf16>, vector<46x128xbf16> -> vector<46x896xbf16>
    %c0_12 = arith.constant 0 : index
    %c0_13 = arith.constant 0 : index
    %33 = vector.load %arg6[%c0_12, %c0_13] : memref<896x128xbf16, #tpu.memory_space<vmem>>, vector<896x128xbf16>
    %cst_14 = arith.constant dense<0.000000e+00> : vector<46x128xf32>
    %34 = tpu.matmul %32, %33, %cst_14 {dimension_numbers = #tpu.dot_dimension_numbers<[1], [0], [0], [1], [0, 0, 1, 1], [], []>} : vector<46x896xbf16>, vector<896x128xbf16>, vector<46x128xf32> -> vector<46x128xf32>
    %c0_15 = arith.constant 0 : index
    %c0_16 = arith.constant 0 : index
    %35 = vector.load %arg7[%c0_15, %c0_16] : memref<1x128xf32, #tpu.memory_space<vmem>>, vector<1x128xf32>
    %36 = vector.broadcast %35 : vector<1x128xf32> to vector<46x128xf32>
    %37 = arith.addf %34, %36 : vector<46x128xf32>
    %cst_17 = arith.constant 0.000000e+00 : f32
    %38 = vector.broadcast %cst_17 : f32 to vector<46x128xf32>
    %39 = arith.maximumf %37, %38 : vector<46x128xf32>
    %c0_18 = arith.constant 0 : index
    %c0_19 = arith.constant 0 : index
    %40 = vector.load %arg1[%c0_18, %c0_19] : memref<2x46xf32, #tpu.memory_space<vmem>>, vector<2x46xf32>
    %cst_20 = arith.constant dense<0.000000e+00> : vector<2x128xf32>
    %41 = tpu.matmul %40, %39, %cst_20 {dimension_numbers = #tpu.dot_dimension_numbers<[1], [0], [0], [1], [0, 0, 1, 1], [], []>} : vector<2x46xf32>, vector<46x128xf32>, vector<2x128xf32> -> vector<2x128xf32>
    %42 = arith.truncf %41 : vector<2x128xf32> to vector<2x128xbf16>
    %c0_21 = arith.constant 0 : index
    %c0_22 = arith.constant 0 : index
    %43 = vector.load %arg8[%c0_21, %c0_22] : memref<128x64xbf16, #tpu.memory_space<vmem>>, vector<128x64xbf16>
    %cst_23 = arith.constant dense<0.000000e+00> : vector<2x64xf32>
    %44 = tpu.matmul %42, %43, %cst_23 {dimension_numbers = #tpu.dot_dimension_numbers<[1], [0], [0], [1], [0, 0, 1, 1], [], []>} : vector<2x128xbf16>, vector<128x64xbf16>, vector<2x64xf32> -> vector<2x64xf32>
    %c0_24 = arith.constant 0 : index
    %c0_25 = arith.constant 0 : index
    %45 = vector.load %arg9[%c0_24, %c0_25] : memref<1x64xf32, #tpu.memory_space<vmem>>, vector<1x64xf32>
    %46 = vector.broadcast %45 : vector<1x64xf32> to vector<2x64xf32>
    %47 = arith.addf %44, %46 : vector<2x64xf32>
    %cst_26 = arith.constant 0.000000e+00 : f32
    %48 = vector.broadcast %cst_26 : f32 to vector<2x64xf32>
    %49 = arith.maximumf %47, %48 : vector<2x64xf32>
    %50 = arith.truncf %49 : vector<2x64xf32> to vector<2x64xbf16>
    %c0_27 = arith.constant 0 : index
    %c0_28 = arith.constant 0 : index
    %51 = vector.load %arg10[%c0_27, %c0_28] : memref<64x128xbf16, #tpu.memory_space<vmem>>, vector<64x128xbf16>
    %cst_29 = arith.constant dense<0.000000e+00> : vector<2x128xf32>
    %52 = tpu.matmul %50, %51, %cst_29 {dimension_numbers = #tpu.dot_dimension_numbers<[1], [0], [0], [1], [0, 0, 1, 1], [], []>} : vector<2x64xbf16>, vector<64x128xbf16>, vector<2x128xf32> -> vector<2x128xf32>
    %c0_30 = arith.constant 0 : index
    %c0_31 = arith.constant 0 : index
    %53 = vector.load %arg11[%c0_30, %c0_31] : memref<1x128xf32, #tpu.memory_space<vmem>>, vector<1x128xf32>
    %54 = vector.broadcast %53 : vector<1x128xf32> to vector<2x128xf32>
    %55 = arith.addf %52, %54 : vector<2x128xf32>
    %cst_32 = arith.constant 0.000000e+00 : f32
    %56 = vector.broadcast %cst_32 : f32 to vector<2x128xf32>
    %57 = arith.maximumf %55, %56 : vector<2x128xf32>
    %58 = arith.truncf %57 : vector<2x128xf32> to vector<2x128xbf16>
    %c0_33 = arith.constant 0 : index
    %c0_34 = arith.constant 0 : index
    %59 = vector.load %arg12[%c0_33, %c0_34] : memref<128x128xbf16, #tpu.memory_space<vmem>>, vector<128x128xbf16>
    %cst_35 = arith.constant dense<0.000000e+00> : vector<2x128xf32>
    %60 = tpu.matmul %58, %59, %cst_35 {dimension_numbers = #tpu.dot_dimension_numbers<[1], [0], [0], [1], [0, 0, 1, 1], [], []>} : vector<2x128xbf16>, vector<128x128xbf16>, vector<2x128xf32> -> vector<2x128xf32>
    %c0_36 = arith.constant 0 : index
    %c0_37 = arith.constant 0 : index
    %61 = vector.load %arg13[%c0_36, %c0_37] : memref<1x128xf32, #tpu.memory_space<vmem>>, vector<1x128xf32>
    %62 = vector.broadcast %61 : vector<1x128xf32> to vector<2x128xf32>
    %63 = arith.addf %60, %62 : vector<2x128xf32>
    %c0_38 = arith.constant 0 : index
    %c0_39 = arith.constant 0 : index
    %64 = vector.load %arg14[%c0_38, %c0_39] : memref<2x128xf32, #tpu.memory_space<vmem>>, vector<2x128xf32>
    tpu.vector_store %arg14[%c0_38, %c0_39], %63 {strides = array<i32>} : memref<2x128xf32, #tpu.memory_space<vmem>>, vector<2x128xf32>,
    return
  }
}

</mosaic_0001>

<llo_original>
// kernel: cnn1d_forward.1
$region0: #{cnn1d_forward.1}
  #allocation0 [shape = 'u32[]', space=smem, size = 0x4, offset = 0x4, fixed_abs, tag = 'smem constant byte address 0x4 - core index']
  #allocation1 [shape = 'u32[144,128]{1,0:T(1,128)}', space=vmem, size = 0x12000, scoped, tag = 'internal scratch']
  %s0 = inlined_call_operand.vmem [shape: bf16[58,28], index: 0, kind: input, shape index: {}]
  %s1 = inlined_call_operand.vmem [shape: f32[2,46], index: 1, kind: input, shape index: {}]
  %s2 = inlined_call_operand.hbm [shape: bf16[28,256], index: 2, kind: input, shape index: {}]
  %s3 = inlined_call_operand.vmem [shape: f32[1,256], index: 3, kind: input, shape index: {}]
  %s4 = inlined_call_operand.vmem [shape: bf16[1792,128], index: 4, kind: input, shape index: {}]
  %s5 = inlined_call_operand.vmem [shape: f32[1,128], index: 5, kind: input, shape index: {}]
  %s6 = inlined_call_operand.hbm [shape: bf16[896,128], index: 6, kind: input, shape index: {}]
  %s7 = inlined_call_operand.vmem [shape: f32[1,128], index: 7, kind: input, shape index: {}]
  %s8 = inlined_call_operand.vmem [shape: bf16[128,64], index: 8, kind: input, shape index: {}]
  %s9 = inlined_call_operand.vmem [shape: f32[1,64], index: 9, kind: input, shape index: {}]
  %s10 = inlined_call_operand.hbm [shape: bf16[64,128], index: 10, kind: input, shape index: {}]
  %s11 = inlined_call_operand.vmem [shape: f32[1,128], index: 11, kind: input, shape index: {}]
  %s12 = inlined_call_operand.hbm [shape: bf16[128,128], index: 12, kind: input, shape index: {}]
  %s13 = inlined_call_operand.vmem [shape: f32[1,128], index: 13, kind: input, shape index: {}]
  %s14 = inlined_call_operand.vmem [shape: f32[2,128], index: 14, kind: output, shape index: {}]
  %s15 = sld [smem:[#allocation0]]
  $region82: #{cnn1d_forward.1} parent=0
    _
  %s17 = ssub.s32 1, %s15
  %s18 = scalar_select 0, %s17, %s15
  $region1: #{cnn1d_forward.1} parent=0
    #allocation2 [shape = 'u8[16384]{0}', space=vmem, size = 0x4000, scoped, tag = 'input window, operand 2, single buffered']
    #allocation3 [shape = 's32[1]{0}', space=sflag, size = 0x4, scoped, tag = 'scoped memory for cnn1d_forward.1']
    #allocation4 [shape = 'u8[229376]{0}', space=vmem, size = 0x38000, scoped, tag = 'input window, operand 6, single buffered']
    #allocation5 [shape = 's32[1]{0}', space=sflag, size = 0x4, scoped, tag = 'scoped memory for cnn1d_forward.1']
    #allocation6 [shape = 'u8[16384]{0}', space=vmem, size = 0x4000, scoped, tag = 'input window, operand 10, single buffered']
    #allocation7 [shape = 'u8[32768]{0}', space=vmem, size = 0x8000, scoped, tag = 'input window, operand 12, single buffered']
    #allocation8 [shape = 's32[1]{0}', space=sflag, size = 0x4, scoped, tag = 'scoped memory for cnn1d_forward.1']
    %19 = vsyncpa [#allocation3], 0
    %20 = vsyncpa [#allocation5], 0
    %21 = vsyncpa [#allocation8], 0
    // Predicated region
    $region2: #{cnn1d_forward.1} parent=1 // pred_check
      _
    $region3: #{cnn1d_forward.1} parent=1 // pred_check_branch
      %23 = sbr.rel (0) target = $region5
    $region4: #{cnn1d_forward.1} parent=1 // pred_region
      _
    $region5: #{cnn1d_forward.1} parent=1 // pred_fallthru
      _
    // Predicated region
    $region6: #{cnn1d_forward.1} parent=1 // pred_check
      _
    $region7: #{cnn1d_forward.1} parent=1 // pred_check_branch
      %25 = sbr.rel (0) target = $region9
    $region8: #{cnn1d_forward.1} parent=1 // pred_region
      _
    $region9: #{cnn1d_forward.1} parent=1 // pred_fallthru
      _
    // Predicated region
    $region10: #{cnn1d_forward.1} parent=1 // pred_check
      _
    $region11: #{cnn1d_forward.1} parent=1 // pred_check_branch
      %27 = sbr.rel (0) target = $region13
    $region12: #{cnn1d_forward.1} parent=1 // pred_region
      %s29 = ssub.s32 512, 512
      %30 = vsyncadd [#allocation3], %s29
      %s31 = sshll.u32 [#allocation2], 4
      %s32 = int_to_ptr.vmem [resolvable:$true] %s31
      %37 = dma.hbm_to_vmem [thread:$0]  %s2, 512, %s32, [#allocation3], 128, 128, 8
    $region13: #{cnn1d_forward.1} parent=1 // pred_fallthru
      _
    // Predicated region
    $region14: #{cnn1d_forward.1} parent=1 // pred_check
      _
    $region15: #{cnn1d_forward.1} parent=1 // pred_check_branch
      %39 = sbr.rel (0) target = $region17
    $region16: #{cnn1d_forward.1} parent=1 // pred_region
      _
    $region17: #{cnn1d_forward.1} parent=1 // pred_fallthru
      _
    // Predicated region
    $region18: #{cnn1d_forward.1} parent=1 // pred_check
      _
    $region19: #{cnn1d_forward.1} parent=1 // pred_check_branch
      %41 = sbr.rel (0) target = $region21
    $region20: #{cnn1d_forward.1} parent=1 // pred_region
      _
    $region21: #{cnn1d_forward.1} parent=1 // pred_fallthru
      _
    // Predicated region
    $region22: #{cnn1d_forward.1} parent=1 // pred_check
      _
    $region23: #{cnn1d_forward.1} parent=1 // pred_check_branch
      %43 = sbr.rel (0) target = $region25
    $region24: #{cnn1d_forward.1} parent=1 // pred_region
      _
    $region25: #{cnn1d_forward.1} parent=1 // pred_fallthru
      _
    // Predicated region
    $region26: #{cnn1d_forward.1} parent=1 // pred_check
      _
    $region27: #{cnn1d_forward.1} parent=1 // pred_check_branch
      %45 = sbr.rel (0) target = $region29
    $region28: #{cnn1d_forward.1} parent=1 // pred_region
      %s47 = ssub.s32 7168, 7168
      %48 = vsyncadd [#allocation5], %s47
      %s49 = sshll.u32 [#allocation4], 4
      %s50 = int_to_ptr.vmem [resolvable:$true] %s49
      %55 = dma.hbm_to_vmem [thread:$0]  %s6, 7168, %s50, [#allocation5], 64, 64, 4
    $region29: #{cnn1d_forward.1} parent=1 // pred_fallthru
      _
    // Predicated region
    $region30: #{cnn1d_forward.1} parent=1 // pred_check
      _
    $region31: #{cnn1d_forward.1} parent=1 // pred_check_branch
      %57 = sbr.rel (0) target = $region33
    $region32: #{cnn1d_forward.1} parent=1 // pred_region
      _
    $region33: #{cnn1d_forward.1} parent=1 // pred_fallthru
      _
    // Predicated region
    $region34: #{cnn1d_forward.1} parent=1 // pred_check
      _
    $region35: #{cnn1d_forward.1} parent=1 // pred_check_branch
      %59 = sbr.rel (0) target = $region37
    $region36: #{cnn1d_forward.1} parent=1 // pred_region
      _
    $region37: #{cnn1d_forward.1} parent=1 // pred_fallthru
      _
    // Predicated region
    $region38: #{cnn1d_forward.1} parent=1 // pred_check
      _
    $region39: #{cnn1d_forward.1} parent=1 // pred_check_branch
      %61 = sbr.rel (0) target = $region41
    $region40: #{cnn1d_forward.1} parent=1 // pred_region
      _
    $region41: #{cnn1d_forward.1} parent=1 // pred_fallthru
      _
    // Predicated region
    $region42: #{cnn1d_forward.1} parent=1 // pred_check
      _
    $region43: #{cnn1d_forward.1} parent=1 // pred_check_branch
      %63 = sbr.rel (0) target = $region45
    $region44: #{cnn1d_forward.1} parent=1 // pred_region
      %s65 = ssub.s32 512, 512
      %66 = vsyncadd [#allocation5], %s65
      %s67 = sshll.u32 [#allocation6], 4
      %s68 = int_to_ptr.vmem [resolvable:$true] %s67
      %73 = dma.hbm_to_vmem [thread:$0]  %s10, 512, %s68, [#allocation5], 64, 64, 4
    $region45: #{cnn1d_forward.1} parent=1 // pred_fallthru
      _
    // Predicated region
    $region46: #{cnn1d_forward.1} parent=1 // pred_check
      _
    $region47: #{cnn1d_forward.1} parent=1 // pred_check_branch
      %75 = sbr.rel (0) target = $region49
    $region48: #{cnn1d_forward.1} parent=1 // pred_region
      _
    $region49: #{cnn1d_forward.1} parent=1 // pred_fallthru
      _
    // Predicated region
    $region50: #{cnn1d_forward.1} parent=1 // pred_check
      _
    $region51: #{cnn1d_forward.1} parent=1 // pred_check_branch
      %77 = sbr.rel (0) target = $region53
    $region52: #{cnn1d_forward.1} parent=1 // pred_region
      %s79 = ssub.s32 1024, 1024
      %80 = vsyncadd [#allocation8], %s79
      %s81 = sshll.u32 [#allocation7], 4
      %s82 = int_to_ptr.vmem [resolvable:$true] %s81
      %87 = dma.hbm_to_vmem [thread:$0]  %s12, 1024, %s82, [#allocation8], 64, 64, 4
    $region53: #{cnn1d_forward.1} parent=1 // pred_fallthru
      _
    // Predicated region
    $region54: #{cnn1d_forward.1} parent=1 // pred_check
      _
    $region55: #{cnn1d_forward.1} parent=1 // pred_check_branch
      %89 = sbr.rel (0) target = $region57
    $region56: #{cnn1d_forward.1} parent=1 // pred_region
      _
    $region57: #{cnn1d_forward.1} parent=1 // pred_fallthru
      _
    // Predicated region
    $region58: #{cnn1d_forward.1} parent=1 // pred_check
      _
    $region59: #{cnn1d_forward.1} parent=1 // pred_check_branch
      %91 = sbr.rel (0) target = $region61
    $region60: #{cnn1d_forward.1} parent=1 // pred_region
      %92 = dma.done [#allocation3], 512
    $region61: #{cnn1d_forward.1} parent=1 // pred_fallthru
      _
    // Predicated region
    $region62: #{cnn1d_forward.1} parent=1 // pred_check
      _
    $region63: #{cnn1d_forward.1} parent=1 // pred_check_branch
      %94 = sbr.rel (0) target = $region65
    $region64: #{cnn1d_forward.1} parent=1 // pred_region
      %95 = dma.done [#allocation5], 7168
    $region65: #{cnn1d_forward.1} parent=1 // pred_fallthru
      _
    // Predicated region
    $region66: #{cnn1d_forward.1} parent=1 // pred_check
      _
    $region67: #{cnn1d_forward.1} parent=1 // pred_check_branch
      %97 = sbr.rel (0) target = $region69
    $region68: #{cnn1d_forward.1} parent=1 // pred_region
      %98 = dma.done [#allocation5], 512
    $region69: #{cnn1d_forward.1} parent=1 // pred_fallthru
      _
    // Predicated region
    $region70: #{cnn1d_forward.1} parent=1 // pred_check
      _
    $region71: #{cnn1d_forward.1} parent=1 // pred_check_branch
      %100 = sbr.rel (0) target = $region73
    $region72: #{cnn1d_forward.1} parent=1 // pred_region
      %101 = dma.done [#allocation8], 1024
    $region73: #{cnn1d_forward.1} parent=1 // pred_fallthru
      _
    %v103 = vld [vmem:[%s0] sm:$0xf]
    %v104 = vld [vmem:[%s0 + $0x4] sm:$0xf]
    %v105 = vld [vmem:[%s0 + $0x8] sm:$0xf]
    %v106 = vld [vmem:[%s0 + $0xc] sm:$0xf]
    %v107 = vld [vmem:[%s0 + $0x10] sm:$0xf]
    %v108 = vld [vmem:[%s0 + $0x14] sm:$0xf]
    %v109 = vld [vmem:[%s0 + $0x18] sm:$0xf]
    %v110 = vld [vmem:[%s0 + $0x1c] sm:$0x1]
    %v111 = vld [vmem:[#allocation2] sm:$0xff]
    %v112 = vld [vmem:[#allocation2 + $0x8] sm:$0xff]
    %v113 = vld [vmem:[#allocation2 + $0x10] sm:$0xff]
    %v114 = vld [vmem:[#allocation2 + $0x18] sm:$0x33]
    %v115 = vld [vmem:[%s3] sm:$0x3]
    %v117 = vlaneseq
    %v118 = vshrl.u32 %v117, 7
    %v119 = vsub.s32 0, %v118
    %v120 = vrot.slane %v115, %v119
    %v121 = vlaneseq
    %v122 = vshrl.u32 %v121, 7
    %v123 = vsub.s32 1, %v122
    %v124 = vrot.slane %v115, %v123
    %v135 = vunpack.c.l.b16 %v103
    %v136 = vunpack.c.l.b16 %v104
    %v137 = vunpack.c.l.b16 %v105
    %v138 = vunpack.c.l.b16 %v106
    %v139 = vunpack.c.l.b16 %v107
    %v140 = vunpack.c.l.b16 %v108
    %v141 = vunpack.c.l.b16 %v109
    %v142 = vunpack.c.l.b16 %v110
    %v143 = vpack.c.b16 %v136, %v135
    %v144 = vpack.c.b16 %v138, %v137
    %v145 = vpack.c.b16 %v140, %v139
    %v146 = vpack.c.b16 %v142, %v141
    %v151 = vunpack.c.l.b16 %v111
    %v152 = vunpack.c.h.b16 %v111
    %v153 = vunpack.c.l.b16 %v112
    %v154 = vunpack.c.h.b16 %v112
    %v155 = vunpack.c.l.b16 %v113
    %v156 = vunpack.c.h.b16 %v113
    %v157 = vunpack.c.l.b16 %v114
    %v158 = vunpack.c.h.b16 %v114
    %v159 = vpack.c.b16 %v153, %v151
    %v160 = vpack.c.b16 %v154, %v152
    %v161 = vpack.c.b16 %v157, %v155
    %v162 = vpack.c.b16 %v158, %v156
    %vm165 = vcmask 228352
    %v167 = vsel %vm165, %v143, 0
    %v170 = vsel %vm165, %v144, 0
    %v173 = vsel %vm165, %v145, 0
    %v176 = vsel %vm165, %v146, 0
    %vm178 = vcmask 1045504
    %v180 = vsel %vm178, %v161, 0
    %v183 = vsel %vm178, %v162, 0
    %185 = vmatprep.subr.bf16.mxu0 %v160
    %186 = vmatpush1.bf16.msra.mxu0 %v159
    %187 = vmatprep.subr.bf16.mxu0 %v183
    %188 = vmatpush1.bf16.msra.mxu0 %v180
    %189 = vmatprep.subr.bf16.mxu0 0
    %190 = vmatpush1.bf16.msra.mxu0 0
    %191 = vmatprep.subr.bf16.mxu0 0
    %192 = vmatpush1.bf16.msra.mxu0 0
    %193 = vmatprep.subr.bf16.mxu0 0
    %194 = vmatpush1.bf16.msra.mxu0 0
    %195 = vmatprep.subr.bf16.mxu0 0
    %196 = vmatpush1.bf16.msra.mxu0 0
    %197 = vmatprep.subr.bf16.mxu0 0
    %198 = vmatpush1.bf16.msra.mxu0 0
    %199 = vmatprep.subr.bf16.mxu0 0
    %200 = vmatpush1.bf16.msra.mxu0 0
    %201 = vmatprep.subr.bf16.mxu0 0
    %202 = vmatpush1.bf16.msra.mxu0 0
    %203 = vmatprep.subr.bf16.mxu0 0
    %204 = vmatpush1.bf16.msra.mxu0 0
    %205 = vmatprep.subr.bf16.mxu0 0
    %206 = vmatpush1.bf16.msra.mxu0 0
    %207 = vmatprep.subr.bf16.mxu0 0
    %208 = vmatpush1.bf16.msra.mxu0 0
    %209 = vmatprep.subr.bf16.mxu0 0
    %210 = vmatpush1.bf16.msra.mxu0 0
    %211 = vmatprep.subr.bf16.mxu0 0
    %212 = vmatpush1.bf16.msra.mxu0 0
    %213 = vmatprep.subr.bf16.mxu0 0
    %214 = vmatpush1.bf16.msra.mxu0 0
    %215 = vmatprep.subr.bf16.mxu0 0
    %216 = vmatpush1.bf16.msra.mxu0 0
    %217 = vmatprep.mubr.bf16.mxu0 0
    %218 = vmatmul.mubr.bf16.gmra.mrb[0].mxu0 %v167
    %v219 = vpop.f32.mrb[0].mxu0
    %v220 = vadd.f32 %v120, %v219
    %v221 = vpop.f32.mrb[0].mxu0
    %v222 = vadd.f32 %v124, %v221
    %v223 = vpop.f32.mrb[0].mxu0
    %v224 = vadd.f32 %v120, %v223
    %v225 = vpop.f32.mrb[0].mxu0
    %v226 = vadd.f32 %v124, %v225
    %227 = vmatprep.mubr.bf16.mxu0 0
    %228 = vmatmul.mubr.bf16.gmra.mrb[0].mxu0 %v170
    %v229 = vpop.f32.mrb[0].mxu0
    %v230 = vadd.f32 %v120, %v229
    %v231 = vpop.f32.mrb[0].mxu0
    %v232 = vadd.f32 %v124, %v231
    %v233 = vpop.f32.mrb[0].mxu0
    %v234 = vadd.f32 %v120, %v233
    %v235 = vpop.f32.mrb[0].mxu0
    %v236 = vadd.f32 %v124, %v235
    %237 = vmatprep.mubr.bf16.mxu0 0
    %238 = vmatmul.mubr.bf16.gmra.mrb[0].mxu0 %v173
    %v239 = vpop.f32.mrb[0].mxu0
    %v240 = vadd.f32 %v120, %v239
    %v241 = vpop.f32.mrb[0].mxu0
    %v242 = vadd.f32 %v124, %v241
    %v243 = vpop.f32.mrb[0].mxu0
    %v244 = vadd.f32 %v120, %v243
    %v245 = vpop.f32.mrb[0].mxu0
    %v246 = vadd.f32 %v124, %v245
    %247 = vmatprep.mubr.bf16.mxu0 0
    %248 = vmatmul.mubr.bf16.gmra.mrb[0].mxu0 %v176
    %v249 = vpop.f32.mrb[0].mxu0
    %v250 = vadd.f32 %v120, %v249
    %v251 = vpop.f32.mrb[0].mxu0
    %v252 = vadd.f32 %v124, %v251
    %v253 = vpop.f32.mrb[0].mxu0
    %v254 = vadd.f32 %v120, %v253
    %v255 = vpop.f32.mrb[0].mxu0
    %v256 = vadd.f32 %v124, %v255
    %257 = vdwg.mxu0
    %v258 = vmax.f32 %v220, 0.0
    %v259 = vmax.f32 %v222, 0.0
    %v260 = vmax.f32 %v224, 0.0
    %v261 = vmax.f32 %v226, 0.0
    %v262 = vmax.f32 %v230, 0.0
    %v263 = vmax.f32 %v232, 0.0
    %v264 = vmax.f32 %v234, 0.0
    %v265 = vmax.f32 %v236, 0.0
    %v266 = vmax.f32 %v240, 0.0
    %v267 = vmax.f32 %v242, 0.0
    %v268 = vmax.f32 %v244, 0.0
    %v269 = vmax.f32 %v246, 0.0
    %v270 = vmax.f32 %v250, 0.0
    %v271 = vmax.f32 %v252, 0.0
    %v272 = vmax.f32 %v254, 0.0
    %v273 = vmax.f32 %v256, 0.0
    %v274 = vpack.c.bf16 %v260, %v258
    %v275 = vpack.c.bf16 %v261, %v259
    %v276 = vpack.c.bf16 %v264, %v262
    %v277 = vpack.c.bf16 %v265, %v263
    %v278 = vpack.c.bf16 %v268, %v266
    %v279 = vpack.c.bf16 %v269, %v267
    %v280 = vpack.c.bf16 %v272, %v270
    %v281 = vpack.c.bf16 %v273, %v271
    %vm282 = vsmask.f32 7424
    %v284 = vshrl.u32 %v274, 16
    %v286 = vshll.u32 %v274, 16
    %v288 = vrot.slane %v286, 1
    %v289 = vor.u32 %v284, %v288
    %v291 = vshll.u32 %v276, 16
    %v293 = vrot.slane %v291, 1
    %v294 = vsel %vm282, %v289, %v293
    %v296 = vshrl.u32 %v275, 16
    %v298 = vshll.u32 %v275, 16
    %v300 = vrot.slane %v298, 1
    %v301 = vor.u32 %v296, %v300
    %v303 = vshll.u32 %v277, 16
    %v305 = vrot.slane %v303, 1
    %v306 = vsel %vm282, %v301, %v305
    %v307 = vshrl.u32 %v276, 16
    %v309 = vor.u32 %v307, %v293
    %v311 = vshll.u32 %v278, 16
    %v313 = vrot.slane %v311, 1
    %v314 = vsel %vm282, %v309, %v313
    %v315 = vshrl.u32 %v277, 16
    %v317 = vor.u32 %v315, %v305
    %v319 = vshll.u32 %v279, 16
    %v321 = vrot.slane %v319, 1
    %v322 = vsel %vm282, %v317, %v321
    %v323 = vshrl.u32 %v278, 16
    %v325 = vor.u32 %v323, %v313
    %v327 = vshll.u32 %v280, 16
    %v329 = vrot.slane %v327, 1
    %v330 = vsel %vm282, %v325, %v329
    %v331 = vshrl.u32 %v279, 16
    %v333 = vor.u32 %v331, %v321
    %v335 = vshll.u32 %v281, 16
    %v337 = vrot.slane %v335, 1
    %v338 = vsel %vm282, %v333, %v337
    %v339 = vshrl.u32 %v280, 16
    %v341 = vor.u32 %v339, %v329
    %v342 = vshrl.u32 %v281, 16
    %v344 = vor.u32 %v342, %v337
    %vm361 = vcmask 1046528
    %v362 = vrot.slane %v274, 1
    %v363 = vrot.slane %v276, 1
    %v364 = vsel %vm361, %v362, %v363
    %v365 = vrot.slane %v275, 1
    %v366 = vrot.slane %v277, 1
    %v367 = vsel %vm361, %v365, %v366
    %v368 = vrot.slane %v278, 1
    %v369 = vsel %vm361, %v363, %v368
    %v370 = vrot.slane %v279, 1
    %v371 = vsel %vm361, %v366, %v370
    %v372 = vrot.slane %v280, 1
    %v373 = vsel %vm361, %v368, %v372
    %v374 = vrot.slane %v281, 1
    %v375 = vsel %vm361, %v370, %v374
    %vm384 = vsmask.f32 6400
    %v385 = vrot.slane %v284, 1
    %v386 = vrot.slane %v286, 2
    %v387 = vor.u32 %v385, %v386
    %v388 = vrot.slane %v307, 1
    %v389 = vrot.slane %v291, 2
    %v390 = vor.u32 %v388, %v389
    %v391 = vsel %vm384, %v387, %v390
    %v392 = vrot.slane %v296, 1
    %v393 = vrot.slane %v298, 2
    %v394 = vor.u32 %v392, %v393
    %v395 = vrot.slane %v315, 1
    %v396 = vrot.slane %v303, 2
    %v397 = vor.u32 %v395, %v396
    %v398 = vsel %vm384, %v394, %v397
    %v399 = vrot.slane %v323, 1
    %v400 = vrot.slane %v311, 2
    %v401 = vor.u32 %v399, %v400
    %v402 = vsel %vm384, %v390, %v401
    %v403 = vrot.slane %v331, 1
    %v404 = vrot.slane %v319, 2
    %v405 = vor.u32 %v403, %v404
    %v406 = vsel %vm384, %v397, %v405
    %v407 = vrot.slane %v339, 1
    %v408 = vrot.slane %v327, 2
    %v409 = vor.u32 %v407, %v408
    %v410 = vsel %vm384, %v401, %v409
    %v411 = vrot.slane %v342, 1
    %v412 = vrot.slane %v335, 2
    %v413 = vor.u32 %v411, %v412
    %v414 = vsel %vm384, %v405, %v413
    %vm423 = vcmask 1045504
    %v424 = vrot.slane %v274, 2
    %v425 = vrot.slane %v276, 2
    %v426 = vsel %vm423, %v424, %v425
    %v427 = vrot.slane %v275, 2
    %v428 = vrot.slane %v277, 2
    %v429 = vsel %vm423, %v427, %v428
    %v430 = vrot.slane %v278, 2
    %v431 = vsel %vm423, %v425, %v430
    %v432 = vrot.slane %v279, 2
    %v433 = vsel %vm423, %v428, %v432
    %v434 = vrot.slane %v280, 2
    %v435 = vsel %vm423, %v430, %v434
    %v436 = vrot.slane %v281, 2
    %v437 = vsel %vm423, %v432, %v436
    %vm446 = vsmask.f32 5376
    %v447 = vrot.slane %v284, 2
    %v448 = vrot.slane %v286, 3
    %v449 = vor.u32 %v447, %v448
    %v450 = vrot.slane %v307, 2
    %v451 = vrot.slane %v291, 3
    %v452 = vor.u32 %v450, %v451
    %v453 = vsel %vm446, %v449, %v452
    %v454 = vrot.slane %v296, 2
    %v455 = vrot.slane %v298, 3
    %v456 = vor.u32 %v454, %v455
    %v457 = vrot.slane %v315, 2
    %v458 = vrot.slane %v303, 3
    %v459 = vor.u32 %v457, %v458
    %v460 = vsel %vm446, %v456, %v459
    %v461 = vrot.slane %v323, 2
    %v462 = vrot.slane %v311, 3
    %v463 = vor.u32 %v461, %v462
    %v464 = vsel %vm446, %v452, %v463
    %v465 = vrot.slane %v331, 2
    %v466 = vrot.slane %v319, 3
    %v467 = vor.u32 %v465, %v466
    %v468 = vsel %vm446, %v459, %v467
    %v469 = vrot.slane %v339, 2
    %v470 = vrot.slane %v327, 3
    %v471 = vor.u32 %v469, %v470
    %v472 = vsel %vm446, %v463, %v471
    %v473 = vrot.slane %v342, 2
    %v474 = vrot.slane %v335, 3
    %v475 = vor.u32 %v473, %v474
    %v476 = vsel %vm446, %v467, %v475
    %vm485 = vcmask 1044480
    %v486 = vrot.slane %v274, 3
    %v487 = vrot.slane %v276, 3
    %v488 = vsel %vm485, %v486, %v487
    %v489 = vrot.slane %v275, 3
    %v490 = vrot.slane %v277, 3
    %v491 = vsel %vm485, %v489, %v490
    %v492 = vrot.slane %v278, 3
    %v493 = vsel %vm485, %v487, %v492
    %v494 = vrot.slane %v279, 3
    %v495 = vsel %vm485, %v490, %v494
    %v496 = vrot.slane %v280, 3
    %v497 = vsel %vm485, %v492, %v496
    %v498 = vrot.slane %v281, 3
    %v499 = vsel %vm485, %v494, %v498
    %v508 = vld [vmem:[%s4] sm:$0xf]
    %v509 = vld [vmem:[%s4 + $0x4] sm:$0xf]
    %v510 = vld [vmem:[%s4 + $0x8] sm:$0xf]
    %v511 = vld [vmem:[%s4 + $0xc] sm:$0xf]
    %v512 = vld [vmem:[%s4 + $0x10] sm:$0xf]
    %v513 = vld [vmem:[%s4 + $0x14] sm:$0xf]
    %v514 = vld [vmem:[%s4 + $0x18] sm:$0xf]
    %v515 = vld [vmem:[%s4 + $0x1c] sm:$0xf]
    %v516 = vld [vmem:[%s4 + $0x20] sm:$0xf]
    %v517 = vld [vmem:[%s4 + $0x24] sm:$0xf]
    %v518 = vld [vmem:[%s4 + $0x28] sm:$0xf]
    %v519 = vld [vmem:[%s4 + $0x2c] sm:$0xf]
    %v520 = vld [vmem:[%s4 + $0x30] sm:$0xf]
    %v521 = vld [vmem:[%s4 + $0x34] sm:$0xf]
    %v522 = vld [vmem:[%s4 + $0x38] sm:$0xf]
    %v523 = vld [vmem:[%s4 + $0x3c] sm:$0xf]
    %v524 = vld [vmem:[%s4 + $0x40] sm:$0xf]
    %v525 = vld [vmem:[%s4 + $0x44] sm:$0xf]
    %v526 = vld [vmem:[%s4 + $0x48] sm:$0xf]
    %v527 = vld [vmem:[%s4 + $0x4c] sm:$0xf]
    %v528 = vld [vmem:[%s4 + $0x50] sm:$0xf]
    %v529 = vld [vmem:[%s4 + $0x54] sm:$0xf]
    %v530 = vld [vmem:[%s4 + $0x58] sm:$0xf]
    %v531 = vld [vmem:[%s4 + $0x5c] sm:$0xf]
    %v532 = vld [vmem:[%s4 + $0x60] sm:$0xf]
    %v533 = vld [vmem:[%s4 + $0x64] sm:$0xf]
    %v534 = vld [vmem:[%s4 + $0x68] sm:$0xf]
    %v535 = vld [vmem:[%s4 + $0x6c] sm:$0xf]
    %v536 = vld [vmem:[%s4 + $0x70] sm:$0xf]
    %v537 = vld [vmem:[%s4 + $0x74] sm:$0xf]
    %v538 = vld [vmem:[%s4 + $0x78] sm:$0xf]
    %v539 = vld [vmem:[%s4 + $0x7c] sm:$0xf]
    %v540 = vld [vmem:[%s4 + $0x80] sm:$0xf]
    %v541 = vld [vmem:[%s4 + $0x84] sm:$0xf]
    %v542 = vld [vmem:[%s4 + $0x88] sm:$0xf]
    %v543 = vld [vmem:[%s4 + $0x8c] sm:$0xf]
    %v544 = vld [vmem:[%s4 + $0x90] sm:$0xf]
    %v545 = vld [vmem:[%s4 + $0x94] sm:$0xf]
    %v546 = vld [vmem:[%s4 + $0x98] sm:$0xf]
    %v547 = vld [vmem:[%s4 + $0x9c] sm:$0xf]
    %v548 = vld [vmem:[%s4 + $0xa0] sm:$0xf]
    %v549 = vld [vmem:[%s4 + $0xa4] sm:$0xf]
    %v550 = vld [vmem:[%s4 + $0xa8] sm:$0xf]
    %v551 = vld [vmem:[%s4 + $0xac] sm:$0xf]
    %v552 = vld [vmem:[%s4 + $0xb0] sm:$0xf]
    %v553 = vld [vmem:[%s4 + $0xb4] sm:$0xf]
    %v554 = vld [vmem:[%s4 + $0xb8] sm:$0xf]
    %v555 = vld [vmem:[%s4 + $0xbc] sm:$0xf]
    %v556 = vld [vmem:[%s4 + $0xc0] sm:$0xf]
    %v557 = vld [vmem:[%s4 + $0xc4] sm:$0xf]
    %v558 = vld [vmem:[%s4 + $0xc8] sm:$0xf]
    %v559 = vld [vmem:[%s4 + $0xcc] sm:$0xf]
    %v560 = vld [vmem:[%s4 + $0xd0] sm:$0xf]
    %v561 = vld [vmem:[%s4 + $0xd4] sm:$0xf]
    %v562 = vld [vmem:[%s4 + $0xd8] sm:$0xf]
    %v563 = vld [vmem:[%s4 + $0xdc] sm:$0xf]
    %v564 = vld [vmem:[%s4 + $0xe0] sm:$0xf]
    %v565 = vld [vmem:[%s4 + $0xe4] sm:$0xf]
    %v566 = vld [vmem:[%s4 + $0xe8] sm:$0xf]
    %v567 = vld [vmem:[%s4 + $0xec] sm:$0xf]
    %v568 = vld [vmem:[%s4 + $0xf0] sm:$0xf]
    %v569 = vld [vmem:[%s4 + $0xf4] sm:$0xf]
    %v570 = vld [vmem:[%s4 + $0xf8] sm:$0xf]
    %v571 = vld [vmem:[%s4 + $0xfc] sm:$0xf]
    %v572 = vld [vmem:[%s4 + $0x100] sm:$0xf]
    %v573 = vld [vmem:[%s4 + $0x104] sm:$0xf]
    %v574 = vld [vmem:[%s4 + $0x108] sm:$0xf]
    %v575 = vld [vmem:[%s4 + $0x10c] sm:$0xf]
    %v576 = vld [vmem:[%s4 + $0x110] sm:$0xf]
    %v577 = vld [vmem:[%s4 + $0x114] sm:$0xf]
    %v578 = vld [vmem:[%s4 + $0x118] sm:$0xf]
    %v579 = vld [vmem:[%s4 + $0x11c] sm:$0xf]
    %v580 = vld [vmem:[%s4 + $0x120] sm:$0xf]
    %v581 = vld [vmem:[%s4 + $0x124] sm:$0xf]
    %v582 = vld [vmem:[%s4 + $0x128] sm:$0xf]
    %v583 = vld [vmem:[%s4 + $0x12c] sm:$0xf]
    %v584 = vld [vmem:[%s4 + $0x130] sm:$0xf]
    %v585 = vld [vmem:[%s4 + $0x134] sm:$0xf]
    %v586 = vld [vmem:[%s4 + $0x138] sm:$0xf]
    %v587 = vld [vmem:[%s4 + $0x13c] sm:$0xf]
    %v588 = vld [vmem:[%s4 + $0x140] sm:$0xf]
    %v589 = vld [vmem:[%s4 + $0x144] sm:$0xf]
    %v590 = vld [vmem:[%s4 + $0x148] sm:$0xf]
    %v591 = vld [vmem:[%s4 + $0x14c] sm:$0xf]
    %v592 = vld [vmem:[%s4 + $0x150] sm:$0xf]
    %v593 = vld [vmem:[%s4 + $0x154] sm:$0xf]
    %v594 = vld [vmem:[%s4 + $0x158] sm:$0xf]
    %v595 = vld [vmem:[%s4 + $0x15c] sm:$0xf]
    %v596 = vld [vmem:[%s4 + $0x160] sm:$0xf]
    %v597 = vld [vmem:[%s4 + $0x164] sm:$0xf]
    %v598 = vld [vmem:[%s4 + $0x168] sm:$0xf]
    %v599 = vld [vmem:[%s4 + $0x16c] sm:$0xf]
    %v600 = vld [vmem:[%s4 + $0x170] sm:$0xf]
    %v601 = vld [vmem:[%s4 + $0x174] sm:$0xf]
    %v602 = vld [vmem:[%s4 + $0x178] sm:$0xf]
    %v603 = vld [vmem:[%s4 + $0x17c] sm:$0xf]
    %v604 = vld [vmem:[%s4 + $0x180] sm:$0xf]
    %v605 = vld [vmem:[%s4 + $0x184] sm:$0xf]
    %v606 = vld [vmem:[%s4 + $0x188] sm:$0xf]
    %v607 = vld [vmem:[%s4 + $0x18c] sm:$0xf]
    %v608 = vld [vmem:[%s4 + $0x190] sm:$0xf]
    %v609 = vld [vmem:[%s4 + $0x194] sm:$0xf]
    %v610 = vld [vmem:[%s4 + $0x198] sm:$0xf]
    %v611 = vld [vmem:[%s4 + $0x19c] sm:$0xf]
    %v612 = vld [vmem:[%s4 + $0x1a0] sm:$0xf]
    %v613 = vld [vmem:[%s4 + $0x1a4] sm:$0xf]
    %v614 = vld [vmem:[%s4 + $0x1a8] sm:$0xf]
    %v615 = vld [vmem:[%s4 + $0x1ac] sm:$0xf]
    %v616 = vld [vmem:[%s4 + $0x1b0] sm:$0xf]
    %v617 = vld [vmem:[%s4 + $0x1b4] sm:$0xf]
    %v618 = vld [vmem:[%s4 + $0x1b8] sm:$0xf]
    %v619 = vld [vmem:[%s4 + $0x1bc] sm:$0xf]
    %v620 = vld [vmem:[%s4 + $0x1c0] sm:$0xf]
    %v621 = vld [vmem:[%s4 + $0x1c4] sm:$0xf]
    %v622 = vld [vmem:[%s4 + $0x1c8] sm:$0xf]
    %v623 = vld [vmem:[%s4 + $0x1cc] sm:$0xf]
    %v624 = vld [vmem:[%s4 + $0x1d0] sm:$0xf]
    %v625 = vld [vmem:[%s4 + $0x1d4] sm:$0xf]
    %v626 = vld [vmem:[%s4 + $0x1d8] sm:$0xf]
    %v627 = vld [vmem:[%s4 + $0x1dc] sm:$0xf]
    %v628 = vld [vmem:[%s4 + $0x1e0] sm:$0xf]
    %v629 = vld [vmem:[%s4 + $0x1e4] sm:$0xf]
    %v630 = vld [vmem:[%s4 + $0x1e8] sm:$0xf]
    %v631 = vld [vmem:[%s4 + $0x1ec] sm:$0xf]
    %v632 = vld [vmem:[%s4 + $0x1f0] sm:$0xf]
    %v633 = vld [vmem:[%s4 + $0x1f4] sm:$0xf]
    %v634 = vld [vmem:[%s4 + $0x1f8] sm:$0xf]
    %v635 = vld [vmem:[%s4 + $0x1fc] sm:$0xf]
    %v636 = vld [vmem:[%s4 + $0x200] sm:$0xf]
    %v637 = vld [vmem:[%s4 + $0x204] sm:$0xf]
    %v638 = vld [vmem:[%s4 + $0x208] sm:$0xf]
    %v639 = vld [vmem:[%s4 + $0x20c] sm:$0xf]
    %v640 = vld [vmem:[%s4 + $0x210] sm:$0xf]
    %v641 = vld [vmem:[%s4 + $0x214] sm:$0xf]
    %v642 = vld [vmem:[%s4 + $0x218] sm:$0xf]
    %v643 = vld [vmem:[%s4 + $0x21c] sm:$0xf]
    %v644 = vld [vmem:[%s4 + $0x220] sm:$0xf]
    %v645 = vld [vmem:[%s4 + $0x224] sm:$0xf]
    %v646 = vld [vmem:[%s4 + $0x228] sm:$0xf]
    %v647 = vld [vmem:[%s4 + $0x22c] sm:$0xf]
    %v648 = vld [vmem:[%s4 + $0x230] sm:$0xf]
    %v649 = vld [vmem:[%s4 + $0x234] sm:$0xf]
    %v650 = vld [vmem:[%s4 + $0x238] sm:$0xf]
    %v651 = vld [vmem:[%s4 + $0x23c] sm:$0xf]
    %v652 = vld [vmem:[%s4 + $0x240] sm:$0xf]
    %v653 = vld [vmem:[%s4 + $0x244] sm:$0xf]
    %v654 = vld [vmem:[%s4 + $0x248] sm:$0xf]
    %v655 = vld [vmem:[%s4 + $0x24c] sm:$0xf]
    %v656 = vld [vmem:[%s4 + $0x250] sm:$0xf]
    %v657 = vld [vmem:[%s4 + $0x254] sm:$0xf]
    %v658 = vld [vmem:[%s4 + $0x258] sm:$0xf]
    %v659 = vld [vmem:[%s4 + $0x25c] sm:$0xf]
    %v660 = vld [vmem:[%s4 + $0x260] sm:$0xf]
    %v661 = vld [vmem:[%s4 + $0x264] sm:$0xf]
    %v662 = vld [vmem:[%s4 + $0x268] sm:$0xf]
    %v663 = vld [vmem:[%s4 + $0x26c] sm:$0xf]
    %v664 = vld [vmem:[%s4 + $0x270] sm:$0xf]
    %v665 = vld [vmem:[%s4 + $0x274] sm:$0xf]
    %v666 = vld [vmem:[%s4 + $0x278] sm:$0xf]
    %v667 = vld [vmem:[%s4 + $0x27c] sm:$0xf]
    %v668 = vld [vmem:[%s4 + $0x280] sm:$0xf]
    %v669 = vld [vmem:[%s4 + $0x284] sm:$0xf]
    %v670 = vld [vmem:[%s4 + $0x288] sm:$0xf]
    %v671 = vld [vmem:[%s4 + $0x28c] sm:$0xf]
    %v672 = vld [vmem:[%s4 + $0x290] sm:$0xf]
    %v673 = vld [vmem:[%s4 + $0x294] sm:$0xf]
    %v674 = vld [vmem:[%s4 + $0x298] sm:$0xf]
    %v675 = vld [vmem:[%s4 + $0x29c] sm:$0xf]
    %v676 = vld [vmem:[%s4 + $0x2a0] sm:$0xf]
    %v677 = vld [vmem:[%s4 + $0x2a4] sm:$0xf]
    %v678 = vld [vmem:[%s4 + $0x2a8] sm:$0xf]
    %v679 = vld [vmem:[%s4 + $0x2ac] sm:$0xf]
    %v680 = vld [vmem:[%s4 + $0x2b0] sm:$0xf]
    %v681 = vld [vmem:[%s4 + $0x2b4] sm:$0xf]
    %v682 = vld [vmem:[%s4 + $0x2b8] sm:$0xf]
    %v683 = vld [vmem:[%s4 + $0x2bc] sm:$0xf]
    %v684 = vld [vmem:[%s4 + $0x2c0] sm:$0xf]
    %v685 = vld [vmem:[%s4 + $0x2c4] sm:$0xf]
    %v686 = vld [vmem:[%s4 + $0x2c8] sm:$0xf]
    %v687 = vld [vmem:[%s4 + $0x2cc] sm:$0xf]
    %v688 = vld [vmem:[%s4 + $0x2d0] sm:$0xf]
    %v689 = vld [vmem:[%s4 + $0x2d4] sm:$0xf]
    %v690 = vld [vmem:[%s4 + $0x2d8] sm:$0xf]
    %v691 = vld [vmem:[%s4 + $0x2dc] sm:$0xf]
    %v692 = vld [vmem:[%s4 + $0x2e0] sm:$0xf]
    %v693 = vld [vmem:[%s4 + $0x2e4] sm:$0xf]
    %v694 = vld [vmem:[%s4 + $0x2e8] sm:$0xf]
    %v695 = vld [vmem:[%s4 + $0x2ec] sm:$0xf]
    %v696 = vld [vmem:[%s4 + $0x2f0] sm:$0xf]
    %v697 = vld [vmem:[%s4 + $0x2f4] sm:$0xf]
    %v698 = vld [vmem:[%s4 + $0x2f8] sm:$0xf]
    %v699 = vld [vmem:[%s4 + $0x2fc] sm:$0xf]
    %v700 = vld [vmem:[%s4 + $0x300] sm:$0xf]
    %v701 = vld [vmem:[%s4 + $0x304] sm:$0xf]
    %v702 = vld [vmem:[%s4 + $0x308] sm:$0xf]
    %v703 = vld [vmem:[%s4 + $0x30c] sm:$0xf]
    %v704 = vld [vmem:[%s4 + $0x310] sm:$0xf]
    %v705 = vld [vmem:[%s4 + $0x314] sm:$0xf]
    %v706 = vld [vmem:[%s4 + $0x318] sm:$0xf]
    %v707 = vld [vmem:[%s4 + $0x31c] sm:$0xf]
    %v708 = vld [vmem:[%s4 + $0x320] sm:$0xf]
    %v709 = vld [vmem:[%s4 + $0x324] sm:$0xf]
    %v710 = vld [vmem:[%s4 + $0x328] sm:$0xf]
    %v711 = vld [vmem:[%s4 + $0x32c] sm:$0xf]
    %v712 = vld [vmem:[%s4 + $0x330] sm:$0xf]
    %v713 = vld [vmem:[%s4 + $0x334] sm:$0xf]
    %v714 = vld [vmem:[%s4 + $0x338] sm:$0xf]
    %v715 = vld [vmem:[%s4 + $0x33c] sm:$0xf]
    %v716 = vld [vmem:[%s4 + $0x340] sm:$0xf]
    %v717 = vld [vmem:[%s4 + $0x344] sm:$0xf]
    %v718 = vld [vmem:[%s4 + $0x348] sm:$0xf]
    %v719 = vld [vmem:[%s4 + $0x34c] sm:$0xf]
    %v720 = vld [vmem:[%s4 + $0x350] sm:$0xf]
    %v721 = vld [vmem:[%s4 + $0x354] sm:$0xf]
    %v722 = vld [vmem:[%s4 + $0x358] sm:$0xf]
    %v723 = vld [vmem:[%s4 + $0x35c] sm:$0xf]
    %v724 = vld [vmem:[%s4 + $0x360] sm:$0xf]
    %v725 = vld [vmem:[%s4 + $0x364] sm:$0xf]
    %v726 = vld [vmem:[%s4 + $0x368] sm:$0xf]
    %v727 = vld [vmem:[%s4 + $0x36c] sm:$0xf]
    %v728 = vld [vmem:[%s4 + $0x370] sm:$0xf]
    %v729 = vld [vmem:[%s4 + $0x374] sm:$0xf]
    %v730 = vld [vmem:[%s4 + $0x378] sm:$0xf]
    %v731 = vld [vmem:[%s4 + $0x37c] sm:$0xf]
    %v732 = vld [vmem:[%s5] sm:$0x1]
    %v734 = vlaneseq
    %v735 = vshrl.u32 %v734, 7
    %v736 = vsub.s32 0, %v735
    %v737 = vrot.slane %v732, %v736
    %v963 = vunpack.c.l.b16 %v508
    %v964 = vunpack.c.l.b16 %v509
    %v965 = vunpack.c.l.b16 %v510
    %v966 = vunpack.c.l.b16 %v511
    %v967 = vunpack.c.l.b16 %v512
    %v968 = vunpack.c.l.b16 %v513
    %v969 = vunpack.c.l.b16 %v514
    %v970 = vunpack.c.l.b16 %v515
    %v971 = vunpack.c.l.b16 %v516
    %v972 = vunpack.c.l.b16 %v517
    %v973 = vunpack.c.l.b16 %v518
    %v974 = vunpack.c.l.b16 %v519
    %v975 = vunpack.c.l.b16 %v520
    %v976 = vunpack.c.l.b16 %v521
    %v977 = vunpack.c.l.b16 %v522
    %v978 = vunpack.c.l.b16 %v523
    %v979 = vunpack.c.l.b16 %v524
    %v980 = vunpack.c.l.b16 %v525
    %v981 = vunpack.c.l.b16 %v526
    %v982 = vunpack.c.l.b16 %v527
    %v983 = vunpack.c.l.b16 %v528
    %v984 = vunpack.c.l.b16 %v529
    %v985 = vunpack.c.l.b16 %v530
    %v986 = vunpack.c.l.b16 %v531
    %v987 = vunpack.c.l.b16 %v532
    %v988 = vunpack.c.l.b16 %v533
    %v989 = vunpack.c.l.b16 %v534
    %v990 = vunpack.c.l.b16 %v535
    %v991 = vunpack.c.l.b16 %v536
    %v992 = vunpack.c.l.b16 %v537
    %v993 = vunpack.c.l.b16 %v538
    %v994 = vunpack.c.l.b16 %v539
    %v995 = vunpack.c.l.b16 %v540
    %v996 = vunpack.c.l.b16 %v541
    %v997 = vunpack.c.l.b16 %v542
    %v998 = vunpack.c.l.b16 %v543
    %v999 = vunpack.c.l.b16 %v544
    %v1000 = vunpack.c.l.b16 %v545
    %v1001 = vunpack.c.l.b16 %v546
    %v1002 = vunpack.c.l.b16 %v547
    %v1003 = vunpack.c.l.b16 %v548
    %v1004 = vunpack.c.l.b16 %v549
    %v1005 = vunpack.c.l.b16 %v550
    %v1006 = vunpack.c.l.b16 %v551
    %v1007 = vunpack.c.l.b16 %v552
    %v1008 = vunpack.c.l.b16 %v553
    %v1009 = vunpack.c.l.b16 %v554
    %v1010 = vunpack.c.l.b16 %v555
    %v1011 = vunpack.c.l.b16 %v556
    %v1012 = vunpack.c.l.b16 %v557
    %v1013 = vunpack.c.l.b16 %v558
    %v1014 = vunpack.c.l.b16 %v559
    %v1015 = vunpack.c.l.b16 %v560
    %v1016 = vunpack.c.l.b16 %v561
    %v1017 = vunpack.c.l.b16 %v562
    %v1018 = vunpack.c.l.b16 %v563
    %v1019 = vunpack.c.l.b16 %v564
    %v1020 = vunpack.c.l.b16 %v565
    %v1021 = vunpack.c.l.b16 %v566
    %v1022 = vunpack.c.l.b16 %v567
    %v1023 = vunpack.c.l.b16 %v568
    %v1024 = vunpack.c.l.b16 %v569
    %v1025 = vunpack.c.l.b16 %v570
    %v1026 = vunpack.c.l.b16 %v571
    %v1027 = vunpack.c.l.b16 %v572
    %v1028 = vunpack.c.l.b16 %v573
    %v1029 = vunpack.c.l.b16 %v574
    %v1030 = vunpack.c.l.b16 %v575
    %v1031 = vunpack.c.l.b16 %v576
    %v1032 = vunpack.c.l.b16 %v577
    %v1033 = vunpack.c.l.b16 %v578
    %v1034 = vunpack.c.l.b16 %v579
    %v1035 = vunpack.c.l.b16 %v580
    %v1036 = vunpack.c.l.b16 %v581
    %v1037 = vunpack.c.l.b16 %v582
    %v1038 = vunpack.c.l.b16 %v583
    %v1039 = vunpack.c.l.b16 %v584
    %v1040 = vunpack.c.l.b16 %v585
    %v1041 = vunpack.c.l.b16 %v586
    %v1042 = vunpack.c.l.b16 %v587
    %v1043 = vunpack.c.l.b16 %v588
    %v1044 = vunpack.c.l.b16 %v589
    %v1045 = vunpack.c.l.b16 %v590
    %v1046 = vunpack.c.l.b16 %v591
    %v1047 = vunpack.c.l.b16 %v592
    %v1048 = vunpack.c.l.b16 %v593
    %v1049 = vunpack.c.l.b16 %v594
    %v1050 = vunpack.c.l.b16 %v595
    %v1051 = vunpack.c.l.b16 %v596
    %v1052 = vunpack.c.l.b16 %v597
    %v1053 = vunpack.c.l.b16 %v598
    %v1054 = vunpack.c.l.b16 %v599
    %v1055 = vunpack.c.l.b16 %v600
    %v1056 = vunpack.c.l.b16 %v601
    %v1057 = vunpack.c.l.b16 %v602
    %v1058 = vunpack.c.l.b16 %v603
    %v1059 = vunpack.c.l.b16 %v604
    %v1060 = vunpack.c.l.b16 %v605
    %v1061 = vunpack.c.l.b16 %v606
    %v1062 = vunpack.c.l.b16 %v607
    %v1063 = vunpack.c.l.b16 %v608
    %v1064 = vunpack.c.l.b16 %v609
    %v1065 = vunpack.c.l.b16 %v610
    %v1066 = vunpack.c.l.b16 %v611
    %v1067 = vunpack.c.l.b16 %v612
    %v1068 = vunpack.c.l.b16 %v613
    %v1069 = vunpack.c.l.b16 %v614
    %v1070 = vunpack.c.l.b16 %v615
    %v1071 = vunpack.c.l.b16 %v616
    %v1072 = vunpack.c.l.b16 %v617
    %v1073 = vunpack.c.l.b16 %v618
    %v1074 = vunpack.c.l.b16 %v619
    %v1075 = vunpack.c.l.b16 %v620
    %v1076 = vunpack.c.l.b16 %v621
    %v1077 = vunpack.c.l.b16 %v622
    %v1078 = vunpack.c.l.b16 %v623
    %v1079 = vunpack.c.l.b16 %v624
    %v1080 = vunpack.c.l.b16 %v625
    %v1081 = vunpack.c.l.b16 %v626
    %v1082 = vunpack.c.l.b16 %v627
    %v1083 = vunpack.c.l.b16 %v628
    %v1084 = vunpack.c.l.b16 %v629
    %v1085 = vunpack.c.l.b16 %v630
    %v1086 = vunpack.c.l.b16 %v631
    %v1087 = vunpack.c.l.b16 %v632
    %v1088 = vunpack.c.l.b16 %v633
    %v1089 = vunpack.c.l.b16 %v634
    %v1090 = vunpack.c.l.b16 %v635
    %v1091 = vunpack.c.l.b16 %v636
    %v1092 = vunpack.c.l.b16 %v637
    %v1093 = vunpack.c.l.b16 %v638
    %v1094 = vunpack.c.l.b16 %v639
    %v1095 = vunpack.c.l.b16 %v640
    %v1096 = vunpack.c.l.b16 %v641
    %v1097 = vunpack.c.l.b16 %v642
    %v1098 = vunpack.c.l.b16 %v643
    %v1099 = vunpack.c.l.b16 %v644
    %v1100 = vunpack.c.l.b16 %v645
    %v1101 = vunpack.c.l.b16 %v646
    %v1102 = vunpack.c.l.b16 %v647
    %v1103 = vunpack.c.l.b16 %v648
    %v1104 = vunpack.c.l.b16 %v649
    %v1105 = vunpack.c.l.b16 %v650
    %v1106 = vunpack.c.l.b16 %v651
    %v1107 = vunpack.c.l.b16 %v652
    %v1108 = vunpack.c.l.b16 %v653
    %v1109 = vunpack.c.l.b16 %v654
    %v1110 = vunpack.c.l.b16 %v655
    %v1111 = vunpack.c.l.b16 %v656
    %v1112 = vunpack.c.l.b16 %v657
    %v1113 = vunpack.c.l.b16 %v658
    %v1114 = vunpack.c.l.b16 %v659
    %v1115 = vunpack.c.l.b16 %v660
    %v1116 = vunpack.c.l.b16 %v661
    %v1117 = vunpack.c.l.b16 %v662
    %v1118 = vunpack.c.l.b16 %v663
    %v1119 = vunpack.c.l.b16 %v664
    %v1120 = vunpack.c.l.b16 %v665
    %v1121 = vunpack.c.l.b16 %v666
    %v1122 = vunpack.c.l.b16 %v667
    %v1123 = vunpack.c.l.b16 %v668
    %v1124 = vunpack.c.l.b16 %v669
    %v1125 = vunpack.c.l.b16 %v670
    %v1126 = vunpack.c.l.b16 %v671
    %v1127 = vunpack.c.l.b16 %v672
    %v1128 = vunpack.c.l.b16 %v673
    %v1129 = vunpack.c.l.b16 %v674
    %v1130 = vunpack.c.l.b16 %v675
    %v1131 = vunpack.c.l.b16 %v676
    %v1132 = vunpack.c.l.b16 %v677
    %v1133 = vunpack.c.l.b16 %v678
    %v1134 = vunpack.c.l.b16 %v679
    %v1135 = vunpack.c.l.b16 %v680
    %v1136 = vunpack.c.l.b16 %v681
    %v1137 = vunpack.c.l.b16 %v682
    %v1138 = vunpack.c.l.b16 %v683
    %v1139 = vunpack.c.l.b16 %v684
    %v1140 = vunpack.c.l.b16 %v685
    %v1141 = vunpack.c.l.b16 %v686
    %v1142 = vunpack.c.l.b16 %v687
    %v1143 = vunpack.c.l.b16 %v688
    %v1144 = vunpack.c.l.b16 %v689
    %v1145 = vunpack.c.l.b16 %v690
    %v1146 = vunpack.c.l.b16 %v691
    %v1147 = vunpack.c.l.b16 %v692
    %v1148 = vunpack.c.l.b16 %v693
    %v1149 = vunpack.c.l.b16 %v694
    %v1150 = vunpack.c.l.b16 %v695
    %v1151 = vunpack.c.l.b16 %v696
    %v1152 = vunpack.c.l.b16 %v697
    %v1153 = vunpack.c.l.b16 %v698
    %v1154 = vunpack.c.l.b16 %v699
    %v1155 = vunpack.c.l.b16 %v700
    %v1156 = vunpack.c.l.b16 %v701
    %v1157 = vunpack.c.l.b16 %v702
    %v1158 = vunpack.c.l.b16 %v703
    %v1159 = vunpack.c.l.b16 %v704
    %v1160 = vunpack.c.l.b16 %v705
    %v1161 = vunpack.c.l.b16 %v706
    %v1162 = vunpack.c.l.b16 %v707
    %v1163 = vunpack.c.l.b16 %v708
    %v1164 = vunpack.c.l.b16 %v709
    %v1165 = vunpack.c.l.b16 %v710
    %v1166 = vunpack.c.l.b16 %v711
    %v1167 = vunpack.c.l.b16 %v712
    %v1168 = vunpack.c.l.b16 %v713
    %v1169 = vunpack.c.l.b16 %v714
    %v1170 = vunpack.c.l.b16 %v715
    %v1171 = vunpack.c.l.b16 %v716
    %v1172 = vunpack.c.l.b16 %v717
    %v1173 = vunpack.c.l.b16 %v718
    %v1174 = vunpack.c.l.b16 %v719
    %v1175 = vunpack.c.l.b16 %v720
    %v1176 = vunpack.c.l.b16 %v721
    %v1177 = vunpack.c.l.b16 %v722
    %v1178 = vunpack.c.l.b16 %v723
    %v1179 = vunpack.c.l.b16 %v724
    %v1180 = vunpack.c.l.b16 %v725
    %v1181 = vunpack.c.l.b16 %v726
    %v1182 = vunpack.c.l.b16 %v727
    %v1183 = vunpack.c.l.b16 %v728
    %v1184 = vunpack.c.l.b16 %v729
    %v1185 = vunpack.c.l.b16 %v730
    %v1186 = vunpack.c.l.b16 %v731
    %v1187 = vpack.c.b16 %v964, %v963
    %v1188 = vpack.c.b16 %v966, %v965
    %v1189 = vpack.c.b16 %v968, %v967
    %v1190 = vpack.c.b16 %v970, %v969
    %v1191 = vpack.c.b16 %v972, %v971
    %v1192 = vpack.c.b16 %v974, %v973
    %v1193 = vpack.c.b16 %v976, %v975
    %v1194 = vpack.c.b16 %v978, %v977
    %v1195 = vpack.c.b16 %v980, %v979
    %v1196 = vpack.c.b16 %v982, %v981
    %v1197 = vpack.c.b16 %v984, %v983
    %v1198 = vpack.c.b16 %v986, %v985
    %v1199 = vpack.c.b16 %v988, %v987
    %v1200 = vpack.c.b16 %v990, %v989
    %v1201 = vpack.c.b16 %v992, %v991
    %v1202 = vpack.c.b16 %v994, %v993
    %v1203 = vpack.c.b16 %v996, %v995
    %v1204 = vpack.c.b16 %v998, %v997
    %v1205 = vpack.c.b16 %v1000, %v999
    %v1206 = vpack.c.b16 %v1002, %v1001
    %v1207 = vpack.c.b16 %v1004, %v1003
    %v1208 = vpack.c.b16 %v1006, %v1005
    %v1209 = vpack.c.b16 %v1008, %v1007
    %v1210 = vpack.c.b16 %v1010, %v1009
    %v1211 = vpack.c.b16 %v1012, %v1011
    %v1212 = vpack.c.b16 %v1014, %v1013
    %v1213 = vpack.c.b16 %v1016, %v1015
    %v1214 = vpack.c.b16 %v1018, %v1017
    %v1215 = vpack.c.b16 %v1020, %v1019
    %v1216 = vpack.c.b16 %v1022, %v1021
    %v1217 = vpack.c.b16 %v1024, %v1023
    %v1218 = vpack.c.b16 %v1026, %v1025
    %v1219 = vpack.c.b16 %v1028, %v1027
    %v1220 = vpack.c.b16 %v1030, %v1029
    %v1221 = vpack.c.b16 %v1032, %v1031
    %v1222 = vpack.c.b16 %v1034, %v1033
    %v1223 = vpack.c.b16 %v1036, %v1035
    %v1224 = vpack.c.b16 %v1038, %v1037
    %v1225 = vpack.c.b16 %v1040, %v1039
    %v1226 = vpack.c.b16 %v1042, %v1041
    %v1227 = vpack.c.b16 %v1044, %v1043
    %v1228 = vpack.c.b16 %v1046, %v1045
    %v1229 = vpack.c.b16 %v1048, %v1047
    %v1230 = vpack.c.b16 %v1050, %v1049
    %v1231 = vpack.c.b16 %v1052, %v1051
    %v1232 = vpack.c.b16 %v1054, %v1053
    %v1233 = vpack.c.b16 %v1056, %v1055
    %v1234 = vpack.c.b16 %v1058, %v1057
    %v1235 = vpack.c.b16 %v1060, %v1059
    %v1236 = vpack.c.b16 %v1062, %v1061
    %v1237 = vpack.c.b16 %v1064, %v1063
    %v1238 = vpack.c.b16 %v1066, %v1065
    %v1239 = vpack.c.b16 %v1068, %v1067
    %v1240 = vpack.c.b16 %v1070, %v1069
    %v1241 = vpack.c.b16 %v1072, %v1071
    %v1242 = vpack.c.b16 %v1074, %v1073
    %v1243 = vpack.c.b16 %v1076, %v1075
    %v1244 = vpack.c.b16 %v1078, %v1077
    %v1245 = vpack.c.b16 %v1080, %v1079
    %v1246 = vpack.c.b16 %v1082, %v1081
    %v1247 = vpack.c.b16 %v1084, %v1083
    %v1248 = vpack.c.b16 %v1086, %v1085
    %v1249 = vpack.c.b16 %v1088, %v1087
    %v1250 = vpack.c.b16 %v1090, %v1089
    %v1251 = vpack.c.b16 %v1092, %v1091
    %v1252 = vpack.c.b16 %v1094, %v1093
    %v1253 = vpack.c.b16 %v1096, %v1095
    %v1254 = vpack.c.b16 %v1098, %v1097
    %v1255 = vpack.c.b16 %v1100, %v1099
    %v1256 = vpack.c.b16 %v1102, %v1101
    %v1257 = vpack.c.b16 %v1104, %v1103
    %v1258 = vpack.c.b16 %v1106, %v1105
    %v1259 = vpack.c.b16 %v1108, %v1107
    %v1260 = vpack.c.b16 %v1110, %v1109
    %v1261 = vpack.c.b16 %v1112, %v1111
    %v1262 = vpack.c.b16 %v1114, %v1113
    %v1263 = vpack.c.b16 %v1116, %v1115
    %v1264 = vpack.c.b16 %v1118, %v1117
    %v1265 = vpack.c.b16 %v1120, %v1119
    %v1266 = vpack.c.b16 %v1122, %v1121
    %v1267 = vpack.c.b16 %v1124, %v1123
    %v1268 = vpack.c.b16 %v1126, %v1125
    %v1269 = vpack.c.b16 %v1128, %v1127
    %v1270 = vpack.c.b16 %v1130, %v1129
    %v1271 = vpack.c.b16 %v1132, %v1131
    %v1272 = vpack.c.b16 %v1134, %v1133
    %v1273 = vpack.c.b16 %v1136, %v1135
    %v1274 = vpack.c.b16 %v1138, %v1137
    %v1275 = vpack.c.b16 %v1140, %v1139
    %v1276 = vpack.c.b16 %v1142, %v1141
    %v1277 = vpack.c.b16 %v1144, %v1143
    %v1278 = vpack.c.b16 %v1146, %v1145
    %v1279 = vpack.c.b16 %v1148, %v1147
    %v1280 = vpack.c.b16 %v1150, %v1149
    %v1281 = vpack.c.b16 %v1152, %v1151
    %v1282 = vpack.c.b16 %v1154, %v1153
    %v1283 = vpack.c.b16 %v1156, %v1155
    %v1284 = vpack.c.b16 %v1158, %v1157
    %v1285 = vpack.c.b16 %v1160, %v1159
    %v1286 = vpack.c.b16 %v1162, %v1161
    %v1287 = vpack.c.b16 %v1164, %v1163
    %v1288 = vpack.c.b16 %v1166, %v1165
    %v1289 = vpack.c.b16 %v1168, %v1167
    %v1290 = vpack.c.b16 %v1170, %v1169
    %v1291 = vpack.c.b16 %v1172, %v1171
    %v1292 = vpack.c.b16 %v1174, %v1173
    %v1293 = vpack.c.b16 %v1176, %v1175
    %v1294 = vpack.c.b16 %v1178, %v1177
    %v1295 = vpack.c.b16 %v1180, %v1179
    %v1296 = vpack.c.b16 %v1182, %v1181
    %v1297 = vpack.c.b16 %v1184, %v1183
    %v1298 = vpack.c.b16 %v1186, %v1185
    %1411 = vmatprep.subr.bf16.mxu0 0
    %1412 = vmatpush1.bf16.msra.mxu0 %v1187
    %1413 = vmatprep.subr.bf16.mxu0 0
    %1414 = vmatpush1.bf16.msra.mxu0 %v1188
    %1415 = vmatprep.subr.bf16.mxu0 0
    %1416 = vmatpush1.bf16.msra.mxu0 %v1189
    %1417 = vmatprep.subr.bf16.mxu0 0
    %1418 = vmatpush1.bf16.msra.mxu0 %v1190
    %1419 = vmatprep.subr.bf16.mxu0 0
    %1420 = vmatpush1.bf16.msra.mxu0 %v1191
    %1421 = vmatprep.subr.bf16.mxu0 0
    %1422 = vmatpush1.bf16.msra.mxu0 %v1192
    %1423 = vmatprep.subr.bf16.mxu0 0
    %1424 = vmatpush1.bf16.msra.mxu0 %v1193
    %1425 = vmatprep.subr.bf16.mxu0 0
    %1426 = vmatpush1.bf16.msra.mxu0 %v1194
    %1427 = vmatprep.subr.bf16.mxu0 0
    %1428 = vmatpush1.bf16.msra.mxu0 %v1195
    %1429 = vmatprep.subr.bf16.mxu0 0
    %1430 = vmatpush1.bf16.msra.mxu0 %v1196
    %1431 = vmatprep.subr.bf16.mxu0 0
    %1432 = vmatpush1.bf16.msra.mxu0 %v1197
    %1433 = vmatprep.subr.bf16.mxu0 0
    %1434 = vmatpush1.bf16.msra.mxu0 %v1198
    %1435 = vmatprep.subr.bf16.mxu0 0
    %1436 = vmatpush1.bf16.msra.mxu0 %v1199
    %1437 = vmatprep.subr.bf16.mxu0 0
    %1438 = vmatpush1.bf16.msra.mxu0 %v1200
    %1439 = vmatprep.subr.bf16.mxu0 0
    %1440 = vmatpush1.bf16.msra.mxu0 %v1201
    %1441 = vmatprep.subr.bf16.mxu0 0
    %1442 = vmatpush1.bf16.msra.mxu0 %v1202
    %1443 = vmatprep.mubr.bf16.mxu0 %v275
    %1444 = vmatmul.mubr.bf16.gmra.mrb[0].mxu0 %v274
    %v1445 = vpop.f32.mrb[0].mxu0
    %v1446 = vadd.f32 %v737, %v1445
    %v1447 = vpop.f32.mrb[0].mxu0
    %v1448 = vpop.f32.mrb[0].mxu0
    %v1449 = vadd.f32 %v737, %v1448
    %v1450 = vpop.f32.mrb[0].mxu0
    %1451 = vmatprep.mubr.bf16.mxu0 %v277
    %1452 = vmatmul.mubr.bf16.gmra.mrb[0].mxu0 %v276
    %v1453 = vpop.f32.mrb[0].mxu0
    %v1454 = vadd.f32 %v737, %v1453
    %v1455 = vpop.f32.mrb[0].mxu0
    %v1456 = vpop.f32.mrb[0].mxu0
    %v1457 = vadd.f32 %v737, %v1456
    %v1458 = vpop.f32.mrb[0].mxu0
    %1459 = vmatprep.mubr.bf16.mxu0 %v279
    %1460 = vmatmul.mubr.bf16.gmra.mrb[0].mxu0 %v278
    %v1461 = vpop.f32.mrb[0].mxu0
    %v1462 = vadd.f32 %v737, %v1461
    %v1463 = vpop.f32.mrb[0].mxu0
    %v1464 = vpop.f32.mrb[0].mxu0
    %v1465 = vadd.f32 %v737, %v1464
    %v1466 = vpop.f32.mrb[0].mxu0
    %1467 = vmatprep.mubr.bf16.mxu0 %v281
    %1468 = vmatmul.mubr.bf16.gmra.mrb[0].mxu0 %v280
    %v1469 = vpop.f32.mrb[0].mxu0
    %v1470 = vadd.f32 %v737, %v1469
    %v1471 = vpop.f32.mrb[0].mxu0
    %v1472 = vpop.f32.mrb[0].mxu0
    %v1473 = vpop.f32.mrb[0].mxu0
    %1474 = vdwg.mxu0
    %1475 = vmatprep.subr.bf16.mxu0 0
    %1476 = vmatpush1.bf16.msra.mxu0 %v1203
    %1477 = vmatprep.subr.bf16.mxu0 0
    %1478 = vmatpush1.bf16.msra.mxu0 %v1204
    %1479 = vmatprep.subr.bf16.mxu0 0
    %1480 = vmatpush1.bf16.msra.mxu0 %v1205
    %1481 = vmatprep.subr.bf16.mxu0 0
    %1482 = vmatpush1.bf16.msra.mxu0 %v1206
    %1483 = vmatprep.subr.bf16.mxu0 0
    %1484 = vmatpush1.bf16.msra.mxu0 %v1207
    %1485 = vmatprep.subr.bf16.mxu0 0
    %1486 = vmatpush1.bf16.msra.mxu0 %v1208
    %1487 = vmatprep.subr.bf16.mxu0 0
    %1488 = vmatpush1.bf16.msra.mxu0 %v1209
    %1489 = vmatprep.subr.bf16.mxu0 0
    %1490 = vmatpush1.bf16.msra.mxu0 %v1210
    %1491 = vmatprep.subr.bf16.mxu0 0
    %1492 = vmatpush1.bf16.msra.mxu0 %v1211
    %1493 = vmatprep.subr.bf16.mxu0 0
    %1494 = vmatpush1.bf16.msra.mxu0 %v1212
    %1495 = vmatprep.subr.bf16.mxu0 0
    %1496 = vmatpush1.bf16.msra.mxu0 %v1213
    %1497 = vmatprep.subr.bf16.mxu0 0
    %1498 = vmatpush1.bf16.msra.mxu0 %v1214
    %1499 = vmatprep.subr.bf16.mxu0 0
    %1500 = vmatpush1.bf16.msra.mxu0 %v1215
    %1501 = vmatprep.subr.bf16.mxu0 0
    %1502 = vmatpush1.bf16.msra.mxu0 %v1216
    %1503 = vmatprep.subr.bf16.mxu0 0
    %1504 = vmatpush1.bf16.msra.mxu0 %v1217
    %1505 = vmatprep.subr.bf16.mxu0 0
    %1506 = vmatpush1.bf16.msra.mxu0 %v1218
    %1507 = vmatprep.mubr.bf16.mxu0 %v306
    %1508 = vmatmul.mubr.bf16.gmra.mrb[0].mxu0 %v294
    %v1509 = vpop.f32.mrb[0].mxu0
    %v1510 = vadd.f32 %v1446, %v1509
    %v1511 = vpop.f32.mrb[0].mxu0
    %v1512 = vpop.f32.mrb[0].mxu0
    %v1513 = vadd.f32 %v1449, %v1512
    %v1514 = vpop.f32.mrb[0].mxu0
    %1515 = vmatprep.mubr.bf16.mxu0 %v322
    %1516 = vmatmul.mubr.bf16.gmra.mrb[0].mxu0 %v314
    %v1517 = vpop.f32.mrb[0].mxu0
    %v1518 = vadd.f32 %v1454, %v1517
    %v1519 = vpop.f32.mrb[0].mxu0
    %v1520 = vpop.f32.mrb[0].mxu0
    %v1521 = vadd.f32 %v1457, %v1520
    %v1522 = vpop.f32.mrb[0].mxu0
    %1523 = vmatprep.mubr.bf16.mxu0 %v338
    %1524 = vmatmul.mubr.bf16.gmra.mrb[0].mxu0 %v330
    %v1525 = vpop.f32.mrb[0].mxu0
    %v1526 = vadd.f32 %v1462, %v1525
    %v1527 = vpop.f32.mrb[0].mxu0
    %v1528 = vpop.f32.mrb[0].mxu0
    %v1529 = vadd.f32 %v1465, %v1528
    %v1530 = vpop.f32.mrb[0].mxu0
    %1531 = vmatprep.mubr.bf16.mxu0 %v344
    %1532 = vmatmul.mubr.bf16.gmra.mrb[0].mxu0 %v341
    %v1533 = vpop.f32.mrb[0].mxu0
    %v1534 = vadd.f32 %v1470, %v1533
    %v1535 = vpop.f32.mrb[0].mxu0
    %v1536 = vpop.f32.mrb[0].mxu0
    %v1537 = vpop.f32.mrb[0].mxu0
    %1538 = vdwg.mxu0
    %1539 = vmatprep.subr.bf16.mxu0 0
    %1540 = vmatpush1.bf16.msra.mxu0 %v1219
    %1541 = vmatprep.subr.bf16.mxu0 0
    %1542 = vmatpush1.bf16.msra.mxu0 %v1220
    %1543 = vmatprep.subr.bf16.mxu0 0
    %1544 = vmatpush1.bf16.msra.mxu0 %v1221
    %1545 = vmatprep.subr.bf16.mxu0 0
    %1546 = vmatpush1.bf16.msra.mxu0 %v1222
    %1547 = vmatprep.subr.bf16.mxu0 0
    %1548 = vmatpush1.bf16.msra.mxu0 %v1223
    %1549 = vmatprep.subr.bf16.mxu0 0
    %1550 = vmatpush1.bf16.msra.mxu0 %v1224
    %1551 = vmatprep.subr.bf16.mxu0 0
    %1552 = vmatpush1.bf16.msra.mxu0 %v1225
    %1553 = vmatprep.subr.bf16.mxu0 0
    %1554 = vmatpush1.bf16.msra.mxu0 %v1226
    %1555 = vmatprep.subr.bf16.mxu0 0
    %1556 = vmatpush1.bf16.msra.mxu0 %v1227
    %1557 = vmatprep.subr.bf16.mxu0 0
    %1558 = vmatpush1.bf16.msra.mxu0 %v1228
    %1559 = vmatprep.subr.bf16.mxu0 0
    %1560 = vmatpush1.bf16.msra.mxu0 %v1229
    %1561 = vmatprep.subr.bf16.mxu0 0
    %1562 = vmatpush1.bf16.msra.mxu0 %v1230
    %1563 = vmatprep.subr.bf16.mxu0 0
    %1564 = vmatpush1.bf16.msra.mxu0 %v1231
    %1565 = vmatprep.subr.bf16.mxu0 0
    %1566 = vmatpush1.bf16.msra.mxu0 %v1232
    %1567 = vmatprep.subr.bf16.mxu0 0
    %1568 = vmatpush1.bf16.msra.mxu0 %v1233
    %1569 = vmatprep.subr.bf16.mxu0 0
    %1570 = vmatpush1.bf16.msra.mxu0 %v1234
    %1571 = vmatprep.mubr.bf16.mxu0 %v367
    %1572 = vmatmul.mubr.bf16.gmra.mrb[0].mxu0 %v364
    %v1573 = vpop.f32.mrb[0].mxu0
    %v1574 = vadd.f32 %v1510, %v1573
    %v1575 = vpop.f32.mrb[0].mxu0
    %v1576 = vpop.f32.mrb[0].mxu0
    %v1577 = vadd.f32 %v1513, %v1576
    %v1578 = vpop.f32.mrb[0].mxu0
    %1579 = vmatprep.mubr.bf16.mxu0 %v371
    %1580 = vmatmul.mubr.bf16.gmra.mrb[0].mxu0 %v369
    %v1581 = vpop.f32.mrb[0].mxu0
    %v1582 = vadd.f32 %v1518, %v1581
    %v1583 = vpop.f32.mrb[0].mxu0
    %v1584 = vpop.f32.mrb[0].mxu0
    %v1585 = vadd.f32 %v1521, %v1584
    %v1586 = vpop.f32.mrb[0].mxu0
    %1587 = vmatprep.mubr.bf16.mxu0 %v375
    %1588 = vmatmul.mubr.bf16.gmra.mrb[0].mxu0 %v373
    %v1589 = vpop.f32.mrb[0].mxu0
    %v1590 = vadd.f32 %v1526, %v1589
    %v1591 = vpop.f32.mrb[0].mxu0
    %v1592 = vpop.f32.mrb[0].mxu0
    %v1593 = vadd.f32 %v1529, %v1592
    %v1594 = vpop.f32.mrb[0].mxu0
    %1595 = vmatprep.mubr.bf16.mxu0 %v374
    %1596 = vmatmul.mubr.bf16.gmra.mrb[0].mxu0 %v372
    %v1597 = vpop.f32.mrb[0].mxu0
    %v1598 = vadd.f32 %v1534, %v1597
    %v1599 = vpop.f32.mrb[0].mxu0
    %v1600 = vpop.f32.mrb[0].mxu0
    %v1601 = vpop.f32.mrb[0].mxu0
    %1602 = vdwg.mxu0
    %1603 = vmatprep.subr.bf16.mxu0 0
    %1604 = vmatpush1.bf16.msra.mxu0 %v1235
    %1605 = vmatprep.subr.bf16.mxu0 0
    %1606 = vmatpush1.bf16.msra.mxu0 %v1236
    %1607 = vmatprep.subr.bf16.mxu0 0
    %1608 = vmatpush1.bf16.msra.mxu0 %v1237
    %1609 = vmatprep.subr.bf16.mxu0 0
    %1610 = vmatpush1.bf16.msra.mxu0 %v1238
    %1611 = vmatprep.subr.bf16.mxu0 0
    %1612 = vmatpush1.bf16.msra.mxu0 %v1239
    %1613 = vmatprep.subr.bf16.mxu0 0
    %1614 = vmatpush1.bf16.msra.mxu0 %v1240
    %1615 = vmatprep.subr.bf16.mxu0 0
    %1616 = vmatpush1.bf16.msra.mxu0 %v1241
    %1617 = vmatprep.subr.bf16.mxu0 0
    %1618 = vmatpush1.bf16.msra.mxu0 %v1242
    %1619 = vmatprep.subr.bf16.mxu0 0
    %1620 = vmatpush1.bf16.msra.mxu0 %v1243
    %1621 = vmatprep.subr.bf16.mxu0 0
    %1622 = vmatpush1.bf16.msra.mxu0 %v1244
    %1623 = vmatprep.subr.bf16.mxu0 0
    %1624 = vmatpush1.bf16.msra.mxu0 %v1245
    %1625 = vmatprep.subr.bf16.mxu0 0
    %1626 = vmatpush1.bf16.msra.mxu0 %v1246
    %1627 = vmatprep.subr.bf16.mxu0 0
    %1628 = vmatpush1.bf16.msra.mxu0 %v1247
    %1629 = vmatprep.subr.bf16.mxu0 0
    %1630 = vmatpush1.bf16.msra.mxu0 %v1248
    %1631 = vmatprep.subr.bf16.mxu0 0
    %1632 = vmatpush1.bf16.msra.mxu0 %v1249
    %1633 = vmatprep.subr.bf16.mxu0 0
    %1634 = vmatpush1.bf16.msra.mxu0 %v1250
    %1635 = vmatprep.mubr.bf16.mxu0 %v398
    %1636 = vmatmul.mubr.bf16.gmra.mrb[0].mxu0 %v391
    %v1637 = vpop.f32.mrb[0].mxu0
    %v1638 = vadd.f32 %v1574, %v1637
    %v1639 = vpop.f32.mrb[0].mxu0
    %v1640 = vpop.f32.mrb[0].mxu0
    %v1641 = vadd.f32 %v1577, %v1640
    %v1642 = vpop.f32.mrb[0].mxu0
    %1643 = vmatprep.mubr.bf16.mxu0 %v406
    %1644 = vmatmul.mubr.bf16.gmra.mrb[0].mxu0 %v402
    %v1645 = vpop.f32.mrb[0].mxu0
    %v1646 = vadd.f32 %v1582, %v1645
    %v1647 = vpop.f32.mrb[0].mxu0
    %v1648 = vpop.f32.mrb[0].mxu0
    %v1649 = vadd.f32 %v1585, %v1648
    %v1650 = vpop.f32.mrb[0].mxu0
    %1651 = vmatprep.mubr.bf16.mxu0 %v414
    %1652 = vmatmul.mubr.bf16.gmra.mrb[0].mxu0 %v410
    %v1653 = vpop.f32.mrb[0].mxu0
    %v1654 = vadd.f32 %v1590, %v1653
    %v1655 = vpop.f32.mrb[0].mxu0
    %v1656 = vpop.f32.mrb[0].mxu0
    %v1657 = vadd.f32 %v1593, %v1656
    %v1658 = vpop.f32.mrb[0].mxu0
    %1659 = vmatprep.mubr.bf16.mxu0 %v413
    %1660 = vmatmul.mubr.bf16.gmra.mrb[0].mxu0 %v409
    %v1661 = vpop.f32.mrb[0].mxu0
    %v1662 = vadd.f32 %v1598, %v1661
    %v1663 = vpop.f32.mrb[0].mxu0
    %v1664 = vpop.f32.mrb[0].mxu0
    %v1665 = vpop.f32.mrb[0].mxu0
    %1666 = vdwg.mxu0
    %1667 = vmatprep.subr.bf16.mxu0 0
    %1668 = vmatpush1.bf16.msra.mxu0 %v1251
    %1669 = vmatprep.subr.bf16.mxu0 0
    %1670 = vmatpush1.bf16.msra.mxu0 %v1252
    %1671 = vmatprep.subr.bf16.mxu0 0
    %1672 = vmatpush1.bf16.msra.mxu0 %v1253
    %1673 = vmatprep.subr.bf16.mxu0 0
    %1674 = vmatpush1.bf16.msra.mxu0 %v1254
    %1675 = vmatprep.subr.bf16.mxu0 0
    %1676 = vmatpush1.bf16.msra.mxu0 %v1255
    %1677 = vmatprep.subr.bf16.mxu0 0
    %1678 = vmatpush1.bf16.msra.mxu0 %v1256
    %1679 = vmatprep.subr.bf16.mxu0 0
    %1680 = vmatpush1.bf16.msra.mxu0 %v1257
    %1681 = vmatprep.subr.bf16.mxu0 0
    %1682 = vmatpush1.bf16.msra.mxu0 %v1258
    %1683 = vmatprep.subr.bf16.mxu0 0
    %1684 = vmatpush1.bf16.msra.mxu0 %v1259
    %1685 = vmatprep.subr.bf16.mxu0 0
    %1686 = vmatpush1.bf16.msra.mxu0 %v1260
    %1687 = vmatprep.subr.bf16.mxu0 0
    %1688 = vmatpush1.bf16.msra.mxu0 %v1261
    %1689 = vmatprep.subr.bf16.mxu0 0
    %1690 = vmatpush1.bf16.msra.mxu0 %v1262
    %1691 = vmatprep.subr.bf16.mxu0 0
    %1692 = vmatpush1.bf16.msra.mxu0 %v1263
    %1693 = vmatprep.subr.bf16.mxu0 0
    %1694 = vmatpush1.bf16.msra.mxu0 %v1264
    %1695 = vmatprep.subr.bf16.mxu0 0
    %1696 = vmatpush1.bf16.msra.mxu0 %v1265
    %1697 = vmatprep.subr.bf16.mxu0 0
    %1698 = vmatpush1.bf16.msra.mxu0 %v1266
    %1699 = vmatprep.mubr.bf16.mxu0 %v429
    %1700 = vmatmul.mubr.bf16.gmra.mrb[0].mxu0 %v426
    %v1701 = vpop.f32.mrb[0].mxu0
    %v1702 = vadd.f32 %v1638, %v1701
    %v1703 = vpop.f32.mrb[0].mxu0
    %v1704 = vpop.f32.mrb[0].mxu0
    %v1705 = vadd.f32 %v1641, %v1704
    %v1706 = vpop.f32.mrb[0].mxu0
    %1707 = vmatprep.mubr.bf16.mxu0 %v433
    %1708 = vmatmul.mubr.bf16.gmra.mrb[0].mxu0 %v431
    %v1709 = vpop.f32.mrb[0].mxu0
    %v1710 = vadd.f32 %v1646, %v1709
    %v1711 = vpop.f32.mrb[0].mxu0
    %v1712 = vpop.f32.mrb[0].mxu0
    %v1713 = vadd.f32 %v1649, %v1712
    %v1714 = vpop.f32.mrb[0].mxu0
    %1715 = vmatprep.mubr.bf16.mxu0 %v437
    %1716 = vmatmul.mubr.bf16.gmra.mrb[0].mxu0 %v435
    %v1717 = vpop.f32.mrb[0].mxu0
    %v1718 = vadd.f32 %v1654, %v1717
    %v1719 = vpop.f32.mrb[0].mxu0
    %v1720 = vpop.f32.mrb[0].mxu0
    %v1721 = vadd.f32 %v1657, %v1720
    %v1722 = vpop.f32.mrb[0].mxu0
    %1723 = vmatprep.mubr.bf16.mxu0 %v436
    %1724 = vmatmul.mubr.bf16.gmra.mrb[0].mxu0 %v434
    %v1725 = vpop.f32.mrb[0].mxu0
    %v1726 = vadd.f32 %v1662, %v1725
    %v1727 = vpop.f32.mrb[0].mxu0
    %v1728 = vpop.f32.mrb[0].mxu0
    %v1729 = vpop.f32.mrb[0].mxu0
    %1730 = vdwg.mxu0
    %1731 = vmatprep.subr.bf16.mxu0 0
    %1732 = vmatpush1.bf16.msra.mxu0 %v1267
    %1733 = vmatprep.subr.bf16.mxu0 0
    %1734 = vmatpush1.bf16.msra.mxu0 %v1268
    %1735 = vmatprep.subr.bf16.mxu0 0
    %1736 = vmatpush1.bf16.msra.mxu0 %v1269
    %1737 = vmatprep.subr.bf16.mxu0 0
    %1738 = vmatpush1.bf16.msra.mxu0 %v1270
    %1739 = vmatprep.subr.bf16.mxu0 0
    %1740 = vmatpush1.bf16.msra.mxu0 %v1271
    %1741 = vmatprep.subr.bf16.mxu0 0
    %1742 = vmatpush1.bf16.msra.mxu0 %v1272
    %1743 = vmatprep.subr.bf16.mxu0 0
    %1744 = vmatpush1.bf16.msra.mxu0 %v1273
    %1745 = vmatprep.subr.bf16.mxu0 0
    %1746 = vmatpush1.bf16.msra.mxu0 %v1274
    %1747 = vmatprep.subr.bf16.mxu0 0
    %1748 = vmatpush1.bf16.msra.mxu0 %v1275
    %1749 = vmatprep.subr.bf16.mxu0 0
    %1750 = vmatpush1.bf16.msra.mxu0 %v1276
    %1751 = vmatprep.subr.bf16.mxu0 0
    %1752 = vmatpush1.bf16.msra.mxu0 %v1277
    %1753 = vmatprep.subr.bf16.mxu0 0
    %1754 = vmatpush1.bf16.msra.mxu0 %v1278
    %1755 = vmatprep.subr.bf16.mxu0 0
    %1756 = vmatpush1.bf16.msra.mxu0 %v1279
    %1757 = vmatprep.subr.bf16.mxu0 0
    %1758 = vmatpush1.bf16.msra.mxu0 %v1280
    %1759 = vmatprep.subr.bf16.mxu0 0
    %1760 = vmatpush1.bf16.msra.mxu0 %v1281
    %1761 = vmatprep.subr.bf16.mxu0 0
    %1762 = vmatpush1.bf16.msra.mxu0 %v1282
    %1763 = vmatprep.mubr.bf16.mxu0 %v460
    %1764 = vmatmul.mubr.bf16.gmra.mrb[0].mxu0 %v453
    %v1765 = vpop.f32.mrb[0].mxu0
    %v1766 = vadd.f32 %v1702, %v1765
    %v1767 = vpop.f32.mrb[0].mxu0
    %v1768 = vpop.f32.mrb[0].mxu0
    %v1769 = vadd.f32 %v1705, %v1768
    %v1770 = vpop.f32.mrb[0].mxu0
    %1771 = vmatprep.mubr.bf16.mxu0 %v468
    %1772 = vmatmul.mubr.bf16.gmra.mrb[0].mxu0 %v464
    %v1773 = vpop.f32.mrb[0].mxu0
    %v1774 = vadd.f32 %v1710, %v1773
    %v1775 = vpop.f32.mrb[0].mxu0
    %v1776 = vpop.f32.mrb[0].mxu0
    %v1777 = vadd.f32 %v1713, %v1776
    %v1778 = vpop.f32.mrb[0].mxu0
    %1779 = vmatprep.mubr.bf16.mxu0 %v476
    %1780 = vmatmul.mubr.bf16.gmra.mrb[0].mxu0 %v472
    %v1781 = vpop.f32.mrb[0].mxu0
    %v1782 = vadd.f32 %v1718, %v1781
    %v1783 = vpop.f32.mrb[0].mxu0
    %v1784 = vpop.f32.mrb[0].mxu0
    %v1785 = vadd.f32 %v1721, %v1784
    %v1786 = vpop.f32.mrb[0].mxu0
    %1787 = vmatprep.mubr.bf16.mxu0 %v475
    %1788 = vmatmul.mubr.bf16.gmra.mrb[0].mxu0 %v471
    %v1789 = vpop.f32.mrb[0].mxu0
    %v1790 = vadd.f32 %v1726, %v1789
    %v1791 = vpop.f32.mrb[0].mxu0
    %v1792 = vpop.f32.mrb[0].mxu0
    %v1793 = vpop.f32.mrb[0].mxu0
    %1794 = vdwg.mxu0
    %1795 = vmatprep.subr.bf16.mxu0 0
    %1796 = vmatpush1.bf16.msra.mxu0 %v1283
    %1797 = vmatprep.subr.bf16.mxu0 0
    %1798 = vmatpush1.bf16.msra.mxu0 %v1284
    %1799 = vmatprep.subr.bf16.mxu0 0
    %1800 = vmatpush1.bf16.msra.mxu0 %v1285
    %1801 = vmatprep.subr.bf16.mxu0 0
    %1802 = vmatpush1.bf16.msra.mxu0 %v1286
    %1803 = vmatprep.subr.bf16.mxu0 0
    %1804 = vmatpush1.bf16.msra.mxu0 %v1287
    %1805 = vmatprep.subr.bf16.mxu0 0
    %1806 = vmatpush1.bf16.msra.mxu0 %v1288
    %1807 = vmatprep.subr.bf16.mxu0 0
    %1808 = vmatpush1.bf16.msra.mxu0 %v1289
    %1809 = vmatprep.subr.bf16.mxu0 0
    %1810 = vmatpush1.bf16.msra.mxu0 %v1290
    %1811 = vmatprep.subr.bf16.mxu0 0
    %1812 = vmatpush1.bf16.msra.mxu0 %v1291
    %1813 = vmatprep.subr.bf16.mxu0 0
    %1814 = vmatpush1.bf16.msra.mxu0 %v1292
    %1815 = vmatprep.subr.bf16.mxu0 0
    %1816 = vmatpush1.bf16.msra.mxu0 %v1293
    %1817 = vmatprep.subr.bf16.mxu0 0
    %1818 = vmatpush1.bf16.msra.mxu0 %v1294
    %1819 = vmatprep.subr.bf16.mxu0 0
    %1820 = vmatpush1.bf16.msra.mxu0 %v1295
    %1821 = vmatprep.subr.bf16.mxu0 0
    %1822 = vmatpush1.bf16.msra.mxu0 %v1296
    %1823 = vmatprep.subr.bf16.mxu0 0
    %1824 = vmatpush1.bf16.msra.mxu0 %v1297
    %1825 = vmatprep.subr.bf16.mxu0 0
    %1826 = vmatpush1.bf16.msra.mxu0 %v1298
    %1827 = vmatprep.mubr.bf16.mxu0 %v491
    %1828 = vmatmul.mubr.bf16.gmra.mrb[0].mxu0 %v488
    %v1829 = vpop.f32.mrb[0].mxu0
    %v1830 = vadd.f32 %v1766, %v1829
    %v1831 = vpop.f32.mrb[0].mxu0
    %v1832 = vpop.f32.mrb[0].mxu0
    %v1833 = vadd.f32 %v1769, %v1832
    %v1834 = vpop.f32.mrb[0].mxu0
    %1835 = vmatprep.mubr.bf16.mxu0 %v495
    %1836 = vmatmul.mubr.bf16.gmra.mrb[0].mxu0 %v493
    %v1837 = vpop.f32.mrb[0].mxu0
    %v1838 = vadd.f32 %v1774, %v1837
    %v1839 = vpop.f32.mrb[0].mxu0
    %v1840 = vpop.f32.mrb[0].mxu0
    %v1841 = vadd.f32 %v1777, %v1840
    %v1842 = vpop.f32.mrb[0].mxu0
    %1843 = vmatprep.mubr.bf16.mxu0 %v499
    %1844 = vmatmul.mubr.bf16.gmra.mrb[0].mxu0 %v497
    %v1845 = vpop.f32.mrb[0].mxu0
    %v1846 = vadd.f32 %v1782, %v1845
    %v1847 = vpop.f32.mrb[0].mxu0
    %v1848 = vpop.f32.mrb[0].mxu0
    %v1849 = vadd.f32 %v1785, %v1848
    %v1850 = vpop.f32.mrb[0].mxu0
    %1851 = vmatprep.mubr.bf16.mxu0 %v498
    %1852 = vmatmul.mubr.bf16.gmra.mrb[0].mxu0 %v496
    %v1853 = vpop.f32.mrb[0].mxu0
    %v1854 = vadd.f32 %v1790, %v1853
    %v1855 = vpop.f32.mrb[0].mxu0
    %v1856 = vpop.f32.mrb[0].mxu0
    %v1857 = vpop.f32.mrb[0].mxu0
    %1858 = vdwg.mxu0
    %v1859 = vmax.f32 %v1830, 0.0
    %v1860 = vmax.f32 %v1833, 0.0
    %v1861 = vmax.f32 %v1838, 0.0
    %v1862 = vmax.f32 %v1841, 0.0
    %v1863 = vmax.f32 %v1846, 0.0
    %v1864 = vmax.f32 %v1849, 0.0
    %v1865 = vmax.f32 %v1854, 0.0
    %v1866 = vpack.c.bf16 %v1860, %v1859
    %v1867 = vpack.c.bf16 %v1862, %v1861
    %v1868 = vpack.c.bf16 %v1864, %v1863
    %v1869 = vpack.c.bf16 %v1865, %v1865
    %v1871 = vshrl.u32 %v1866, 16
    %v1873 = vshll.u32 %v1866, 16
    %v1875 = vrot.slane %v1873, 1
    %v1876 = vor.u32 %v1871, %v1875
    %v1878 = vshll.u32 %v1867, 16
    %v1880 = vrot.slane %v1878, 1
    %v1881 = vsel %vm282, %v1876, %v1880
    %v1882 = vshrl.u32 %v1867, 16
    %v1884 = vor.u32 %v1882, %v1880
    %v1886 = vshll.u32 %v1868, 16
    %v1888 = vrot.slane %v1886, 1
    %v1889 = vsel %vm282, %v1884, %v1888
    %v1890 = vshrl.u32 %v1868, 16
    %v1892 = vor.u32 %v1890, %v1888
    %v1899 = vrot.slane %v1866, 1
    %v1900 = vrot.slane %v1867, 1
    %v1901 = vsel %vm361, %v1899, %v1900
    %v1902 = vrot.slane %v1868, 1
    %v1903 = vsel %vm361, %v1900, %v1902
    %v1907 = vrot.slane %v1871, 1
    %v1908 = vrot.slane %v1873, 2
    %v1909 = vor.u32 %v1907, %v1908
    %v1910 = vrot.slane %v1882, 1
    %v1911 = vrot.slane %v1878, 2
    %v1912 = vor.u32 %v1910, %v1911
    %v1913 = vsel %vm384, %v1909, %v1912
    %v1914 = vrot.slane %v1890, 1
    %v1915 = vrot.slane %v1886, 2
    %v1916 = vor.u32 %v1914, %v1915
    %v1917 = vsel %vm384, %v1912, %v1916
    %v1919 = vshll.u32 %v1869, 16
    %v1921 = vrot.slane %v1919, 2
    %v1922 = vsel %vm384, %v1916, %v1921
    %v1927 = vrot.slane %v1866, 2
    %v1928 = vrot.slane %v1867, 2
    %v1929 = vsel %vm423, %v1927, %v1928
    %v1930 = vrot.slane %v1868, 2
    %v1931 = vsel %vm423, %v1928, %v1930
    %v1932 = vrot.slane %v1869, 2
    %v1933 = vsel %vm423, %v1930, %v1932
    %v1937 = vrot.slane %v1871, 2
    %v1938 = vrot.slane %v1873, 3
    %v1939 = vor.u32 %v1937, %v1938
    %v1940 = vrot.slane %v1882, 2
    %v1941 = vrot.slane %v1878, 3
    %v1942 = vor.u32 %v1940, %v1941
    %v1943 = vsel %vm446, %v1939, %v1942
    %v1944 = vrot.slane %v1890, 2
    %v1945 = vrot.slane %v1886, 3
    %v1946 = vor.u32 %v1944, %v1945
    %v1947 = vsel %vm446, %v1942, %v1946
    %v1948 = vshrl.u32 %v1869, 16
    %v1950 = vrot.slane %v1948, 2
    %v1951 = vrot.slane %v1919, 3
    %v1952 = vor.u32 %v1950, %v1951
    %v1953 = vsel %vm446, %v1946, %v1952
    %v1957 = vrot.slane %v1866, 3
    %v1958 = vrot.slane %v1867, 3
    %v1959 = vsel %vm485, %v1957, %v1958
    %v1960 = vrot.slane %v1868, 3
    %v1961 = vsel %vm485, %v1958, %v1960
    %v1962 = vrot.slane %v1869, 3
    %v1963 = vsel %vm485, %v1960, %v1962
    %v1967 = vld [vmem:[#allocation4] sm:$0xf]
    %v1968 = vld [vmem:[#allocation4 + $0x4] sm:$0xf]
    %v1969 = vld [vmem:[#allocation4 + $0x8] sm:$0xf]
    %v1970 = vld [vmem:[#allocation4 + $0xc] sm:$0xf]
    %v1971 = vld [vmem:[#allocation4 + $0x10] sm:$0xf]
    %v1972 = vld [vmem:[#allocation4 + $0x14] sm:$0xf]
    %v1973 = vld [vmem:[#allocation4 + $0x18] sm:$0xf]
    %v1974 = vld [vmem:[#allocation4 + $0x1c] sm:$0xf]
    %v1975 = vld [vmem:[#allocation4 + $0x20] sm:$0xf]
    %v1976 = vld [vmem:[#allocation4 + $0x24] sm:$0xf]
    %v1977 = vld [vmem:[#allocation4 + $0x28] sm:$0xf]
    %v1978 = vld [vmem:[#allocation4 + $0x2c] sm:$0xf]
    %v1979 = vld [vmem:[#allocation4 + $0x30] sm:$0xf]
    %v1980 = vld [vmem:[#allocation4 + $0x34] sm:$0xf]
    %v1981 = vld [vmem:[#allocation4 + $0x38] sm:$0xf]
    %v1982 = vld [vmem:[#allocation4 + $0x3c] sm:$0xf]
    %v1983 = vld [vmem:[#allocation4 + $0x40] sm:$0xf]
    %v1984 = vld [vmem:[#allocation4 + $0x44] sm:$0xf]
    %v1985 = vld [vmem:[#allocation4 + $0x48] sm:$0xf]
    %v1986 = vld [vmem:[#allocation4 + $0x4c] sm:$0xf]
    %v1987 = vld [vmem:[#allocation4 + $0x50] sm:$0xf]
    %v1988 = vld [vmem:[#allocation4 + $0x54] sm:$0xf]
    %v1989 = vld [vmem:[#allocation4 + $0x58] sm:$0xf]
    %v1990 = vld [vmem:[#allocation4 + $0x5c] sm:$0xf]
    %v1991 = vld [vmem:[#allocation4 + $0x60] sm:$0xf]
    %v1992 = vld [vmem:[#allocation4 + $0x64] sm:$0xf]
    %v1993 = vld [vmem:[#allocation4 + $0x68] sm:$0xf]
    %v1994 = vld [vmem:[#allocation4 + $0x6c] sm:$0xf]
    %v1995 = vld [vmem:[#allocation4 + $0x70] sm:$0xf]
    %v1996 = vld [vmem:[#allocation4 + $0x74] sm:$0xf]
    %v1997 = vld [vmem:[#allocation4 + $0x78] sm:$0xf]
    %v1998 = vld [vmem:[#allocation4 + $0x7c] sm:$0xf]
    %v1999 = vld [vmem:[#allocation4 + $0x80] sm:$0xf]
    %v2000 = vld [vmem:[#allocation4 + $0x84] sm:$0xf]
    %v2001 = vld [vmem:[#allocation4 + $0x88] sm:$0xf]
    %v2002 = vld [vmem:[#allocation4 + $0x8c] sm:$0xf]
    %v2003 = vld [vmem:[#allocation4 + $0x90] sm:$0xf]
    %v2004 = vld [vmem:[#allocation4 + $0x94] sm:$0xf]
    %v2005 = vld [vmem:[#allocation4 + $0x98] sm:$0xf]
    %v2006 = vld [vmem:[#allocation4 + $0x9c] sm:$0xf]
    %v2007 = vld [vmem:[#allocation4 + $0xa0] sm:$0xf]
    %v2008 = vld [vmem:[#allocation4 + $0xa4] sm:$0xf]
    %v2009 = vld [vmem:[#allocation4 + $0xa8] sm:$0xf]
    %v2010 = vld [vmem:[#allocation4 + $0xac] sm:$0xf]
    %v2011 = vld [vmem:[#allocation4 + $0xb0] sm:$0xf]
    %v2012 = vld [vmem:[#allocation4 + $0xb4] sm:$0xf]
    %v2013 = vld [vmem:[#allocation4 + $0xb8] sm:$0xf]
    %v2014 = vld [vmem:[#allocation4 + $0xbc] sm:$0xf]
    %v2015 = vld [vmem:[#allocation4 + $0xc0] sm:$0xf]
    %v2016 = vld [vmem:[#allocation4 + $0xc4] sm:$0xf]
    %v2017 = vld [vmem:[#allocation4 + $0xc8] sm:$0xf]
    %v2018 = vld [vmem:[#allocation4 + $0xcc] sm:$0xf]
    %v2019 = vld [vmem:[#allocation4 + $0xd0] sm:$0xf]
    %v2020 = vld [vmem:[#allocation4 + $0xd4] sm:$0xf]
    %v2021 = vld [vmem:[#allocation4 + $0xd8] sm:$0xf]
    %v2022 = vld [vmem:[#allocation4 + $0xdc] sm:$0xf]
    %v2023 = vld [vmem:[#allocation4 + $0xe0] sm:$0xf]
    %v2024 = vld [vmem:[#allocation4 + $0xe4] sm:$0xf]
    %v2025 = vld [vmem:[#allocation4 + $0xe8] sm:$0xf]
    %v2026 = vld [vmem:[#allocation4 + $0xec] sm:$0xf]
    %v2027 = vld [vmem:[#allocation4 + $0xf0] sm:$0xf]
    %v2028 = vld [vmem:[#allocation4 + $0xf4] sm:$0xf]
    %v2029 = vld [vmem:[#allocation4 + $0xf8] sm:$0xf]
    %v2030 = vld [vmem:[#allocation4 + $0xfc] sm:$0xf]
    %v2031 = vld [vmem:[#allocation4 + $0x100] sm:$0xf]
    %v2032 = vld [vmem:[#allocation4 + $0x104] sm:$0xf]
    %v2033 = vld [vmem:[#allocation4 + $0x108] sm:$0xf]
    %v2034 = vld [vmem:[#allocation4 + $0x10c] sm:$0xf]
    %v2035 = vld [vmem:[#allocation4 + $0x110] sm:$0xf]
    %v2036 = vld [vmem:[#allocation4 + $0x114] sm:$0xf]
    %v2037 = vld [vmem:[#allocation4 + $0x118] sm:$0xf]
    %v2038 = vld [vmem:[#allocation4 + $0x11c] sm:$0xf]
    %v2039 = vld [vmem:[#allocation4 + $0x120] sm:$0xf]
    %v2040 = vld [vmem:[#allocation4 + $0x124] sm:$0xf]
    %v2041 = vld [vmem:[#allocation4 + $0x128] sm:$0xf]
    %v2042 = vld [vmem:[#allocation4 + $0x12c] sm:$0xf]
    %v2043 = vld [vmem:[#allocation4 + $0x130] sm:$0xf]
    %v2044 = vld [vmem:[#allocation4 + $0x134] sm:$0xf]
    %v2045 = vld [vmem:[#allocation4 + $0x138] sm:$0xf]
    %v2046 = vld [vmem:[#allocation4 + $0x13c] sm:$0xf]
    %v2047 = vld [vmem:[#allocation4 + $0x140] sm:$0xf]
    %v2048 = vld [vmem:[#allocation4 + $0x144] sm:$0xf]
    %v2049 = vld [vmem:[#allocation4 + $0x148] sm:$0xf]
    %v2050 = vld [vmem:[#allocation4 + $0x14c] sm:$0xf]
    %v2051 = vld [vmem:[#allocation4 + $0x150] sm:$0xf]
    %v2052 = vld [vmem:[#allocation4 + $0x154] sm:$0xf]
    %v2053 = vld [vmem:[#allocation4 + $0x158] sm:$0xf]
    %v2054 = vld [vmem:[#allocation4 + $0x15c] sm:$0xf]
    %v2055 = vld [vmem:[#allocation4 + $0x160] sm:$0xf]
    %v2056 = vld [vmem:[#allocation4 + $0x164] sm:$0xf]
    %v2057 = vld [vmem:[#allocation4 + $0x168] sm:$0xf]
    %v2058 = vld [vmem:[#allocation4 + $0x16c] sm:$0xf]
    %v2059 = vld [vmem:[#allocation4 + $0x170] sm:$0xf]
    %v2060 = vld [vmem:[#allocation4 + $0x174] sm:$0xf]
    %v2061 = vld [vmem:[#allocation4 + $0x178] sm:$0xf]
    %v2062 = vld [vmem:[#allocation4 + $0x17c] sm:$0xf]
    %v2063 = vld [vmem:[#allocation4 + $0x180] sm:$0xf]
    %v2064 = vld [vmem:[#allocation4 + $0x184] sm:$0xf]
    %v2065 = vld [vmem:[#allocation4 + $0x188] sm:$0xf]
    %v2066 = vld [vmem:[#allocation4 + $0x18c] sm:$0xf]
    %v2067 = vld [vmem:[#allocation4 + $0x190] sm:$0xf]
    %v2068 = vld [vmem:[#allocation4 + $0x194] sm:$0xf]
    %v2069 = vld [vmem:[#allocation4 + $0x198] sm:$0xf]
    %v2070 = vld [vmem:[#allocation4 + $0x19c] sm:$0xf]
    %v2071 = vld [vmem:[#allocation4 + $0x1a0] sm:$0xf]
    %v2072 = vld [vmem:[#allocation4 + $0x1a4] sm:$0xf]
    %v2073 = vld [vmem:[#allocation4 + $0x1a8] sm:$0xf]
    %v2074 = vld [vmem:[#allocation4 + $0x1ac] sm:$0xf]
    %v2075 = vld [vmem:[#allocation4 + $0x1b0] sm:$0xf]
    %v2076 = vld [vmem:[#allocation4 + $0x1b4] sm:$0xf]
    %v2077 = vld [vmem:[#allocation4 + $0x1b8] sm:$0xf]
    %v2078 = vld [vmem:[#allocation4 + $0x1bc] sm:$0xf]
    %v2079 = vld [vmem:[%s7] sm:$0x1]
    %v2081 = vlaneseq
    %v2082 = vshrl.u32 %v2081, 7
    %v2083 = vsub.s32 0, %v2082
    %v2084 = vrot.slane %v2079, %v2083
    %v2198 = vunpack.c.l.b16 %v1967
    %v2199 = vunpack.c.l.b16 %v1968
    %v2200 = vunpack.c.l.b16 %v1969
    %v2201 = vunpack.c.l.b16 %v1970
    %v2202 = vunpack.c.l.b16 %v1971
    %v2203 = vunpack.c.l.b16 %v1972
    %v2204 = vunpack.c.l.b16 %v1973
    %v2205 = vunpack.c.l.b16 %v1974
    %v2206 = vunpack.c.l.b16 %v1975
    %v2207 = vunpack.c.l.b16 %v1976
    %v2208 = vunpack.c.l.b16 %v1977
    %v2209 = vunpack.c.l.b16 %v1978
    %v2210 = vunpack.c.l.b16 %v1979
    %v2211 = vunpack.c.l.b16 %v1980
    %v2212 = vunpack.c.l.b16 %v1981
    %v2213 = vunpack.c.l.b16 %v1982
    %v2214 = vunpack.c.l.b16 %v1983
    %v2215 = vunpack.c.l.b16 %v1984
    %v2216 = vunpack.c.l.b16 %v1985
    %v2217 = vunpack.c.l.b16 %v1986
    %v2218 = vunpack.c.l.b16 %v1987
    %v2219 = vunpack.c.l.b16 %v1988
    %v2220 = vunpack.c.l.b16 %v1989
    %v2221 = vunpack.c.l.b16 %v1990
    %v2222 = vunpack.c.l.b16 %v1991
    %v2223 = vunpack.c.l.b16 %v1992
    %v2224 = vunpack.c.l.b16 %v1993
    %v2225 = vunpack.c.l.b16 %v1994
    %v2226 = vunpack.c.l.b16 %v1995
    %v2227 = vunpack.c.l.b16 %v1996
    %v2228 = vunpack.c.l.b16 %v1997
    %v2229 = vunpack.c.l.b16 %v1998
    %v2230 = vunpack.c.l.b16 %v1999
    %v2231 = vunpack.c.l.b16 %v2000
    %v2232 = vunpack.c.l.b16 %v2001
    %v2233 = vunpack.c.l.b16 %v2002
    %v2234 = vunpack.c.l.b16 %v2003
    %v2235 = vunpack.c.l.b16 %v2004
    %v2236 = vunpack.c.l.b16 %v2005
    %v2237 = vunpack.c.l.b16 %v2006
    %v2238 = vunpack.c.l.b16 %v2007
    %v2239 = vunpack.c.l.b16 %v2008
    %v2240 = vunpack.c.l.b16 %v2009
    %v2241 = vunpack.c.l.b16 %v2010
    %v2242 = vunpack.c.l.b16 %v2011
    %v2243 = vunpack.c.l.b16 %v2012
    %v2244 = vunpack.c.l.b16 %v2013
    %v2245 = vunpack.c.l.b16 %v2014
    %v2246 = vunpack.c.l.b16 %v2015
    %v2247 = vunpack.c.l.b16 %v2016
    %v2248 = vunpack.c.l.b16 %v2017
    %v2249 = vunpack.c.l.b16 %v2018
    %v2250 = vunpack.c.l.b16 %v2019
    %v2251 = vunpack.c.l.b16 %v2020
    %v2252 = vunpack.c.l.b16 %v2021
    %v2253 = vunpack.c.l.b16 %v2022
    %v2254 = vunpack.c.l.b16 %v2023
    %v2255 = vunpack.c.l.b16 %v2024
    %v2256 = vunpack.c.l.b16 %v2025
    %v2257 = vunpack.c.l.b16 %v2026
    %v2258 = vunpack.c.l.b16 %v2027
    %v2259 = vunpack.c.l.b16 %v2028
    %v2260 = vunpack.c.l.b16 %v2029
    %v2261 = vunpack.c.l.b16 %v2030
    %v2262 = vunpack.c.l.b16 %v2031
    %v2263 = vunpack.c.l.b16 %v2032
    %v2264 = vunpack.c.l.b16 %v2033
    %v2265 = vunpack.c.l.b16 %v2034
    %v2266 = vunpack.c.l.b16 %v2035
    %v2267 = vunpack.c.l.b16 %v2036
    %v2268 = vunpack.c.l.b16 %v2037
    %v2269 = vunpack.c.l.b16 %v2038
    %v2270 = vunpack.c.l.b16 %v2039
    %v2271 = vunpack.c.l.b16 %v2040
    %v2272 = vunpack.c.l.b16 %v2041
    %v2273 = vunpack.c.l.b16 %v2042
    %v2274 = vunpack.c.l.b16 %v2043
    %v2275 = vunpack.c.l.b16 %v2044
    %v2276 = vunpack.c.l.b16 %v2045
    %v2277 = vunpack.c.l.b16 %v2046
    %v2278 = vunpack.c.l.b16 %v2047
    %v2279 = vunpack.c.l.b16 %v2048
    %v2280 = vunpack.c.l.b16 %v2049
    %v2281 = vunpack.c.l.b16 %v2050
    %v2282 = vunpack.c.l.b16 %v2051
    %v2283 = vunpack.c.l.b16 %v2052
    %v2284 = vunpack.c.l.b16 %v2053
    %v2285 = vunpack.c.l.b16 %v2054
    %v2286 = vunpack.c.l.b16 %v2055
    %v2287 = vunpack.c.l.b16 %v2056
    %v2288 = vunpack.c.l.b16 %v2057
    %v2289 = vunpack.c.l.b16 %v2058
    %v2290 = vunpack.c.l.b16 %v2059
    %v2291 = vunpack.c.l.b16 %v2060
    %v2292 = vunpack.c.l.b16 %v2061
    %v2293 = vunpack.c.l.b16 %v2062
    %v2294 = vunpack.c.l.b16 %v2063
    %v2295 = vunpack.c.l.b16 %v2064
    %v2296 = vunpack.c.l.b16 %v2065
    %v2297 = vunpack.c.l.b16 %v2066
    %v2298 = vunpack.c.l.b16 %v2067
    %v2299 = vunpack.c.l.b16 %v2068
    %v2300 = vunpack.c.l.b16 %v2069
    %v2301 = vunpack.c.l.b16 %v2070
    %v2302 = vunpack.c.l.b16 %v2071
    %v2303 = vunpack.c.l.b16 %v2072
    %v2304 = vunpack.c.l.b16 %v2073
    %v2305 = vunpack.c.l.b16 %v2074
    %v2306 = vunpack.c.l.b16 %v2075
    %v2307 = vunpack.c.l.b16 %v2076
    %v2308 = vunpack.c.l.b16 %v2077
    %v2309 = vunpack.c.l.b16 %v2078
    %v2310 = vpack.c.b16 %v2199, %v2198
    %v2311 = vpack.c.b16 %v2201, %v2200
    %v2312 = vpack.c.b16 %v2203, %v2202
    %v2313 = vpack.c.b16 %v2205, %v2204
    %v2314 = vpack.c.b16 %v2207, %v2206
    %v2315 = vpack.c.b16 %v2209, %v2208
    %v2316 = vpack.c.b16 %v2211, %v2210
    %v2317 = vpack.c.b16 %v2213, %v2212
    %v2318 = vpack.c.b16 %v2215, %v2214
    %v2319 = vpack.c.b16 %v2217, %v2216
    %v2320 = vpack.c.b16 %v2219, %v2218
    %v2321 = vpack.c.b16 %v2221, %v2220
    %v2322 = vpack.c.b16 %v2223, %v2222
    %v2323 = vpack.c.b16 %v2225, %v2224
    %v2324 = vpack.c.b16 %v2227, %v2226
    %v2325 = vpack.c.b16 %v2229, %v2228
    %v2326 = vpack.c.b16 %v2231, %v2230
    %v2327 = vpack.c.b16 %v2233, %v2232
    %v2328 = vpack.c.b16 %v2235, %v2234
    %v2329 = vpack.c.b16 %v2237, %v2236
    %v2330 = vpack.c.b16 %v2239, %v2238
    %v2331 = vpack.c.b16 %v2241, %v2240
    %v2332 = vpack.c.b16 %v2243, %v2242
    %v2333 = vpack.c.b16 %v2245, %v2244
    %v2334 = vpack.c.b16 %v2247, %v2246
    %v2335 = vpack.c.b16 %v2249, %v2248
    %v2336 = vpack.c.b16 %v2251, %v2250
    %v2337 = vpack.c.b16 %v2253, %v2252
    %v2338 = vpack.c.b16 %v2255, %v2254
    %v2339 = vpack.c.b16 %v2257, %v2256
    %v2340 = vpack.c.b16 %v2259, %v2258
    %v2341 = vpack.c.b16 %v2261, %v2260
    %v2342 = vpack.c.b16 %v2263, %v2262
    %v2343 = vpack.c.b16 %v2265, %v2264
    %v2344 = vpack.c.b16 %v2267, %v2266
    %v2345 = vpack.c.b16 %v2269, %v2268
    %v2346 = vpack.c.b16 %v2271, %v2270
    %v2347 = vpack.c.b16 %v2273, %v2272
    %v2348 = vpack.c.b16 %v2275, %v2274
    %v2349 = vpack.c.b16 %v2277, %v2276
    %v2350 = vpack.c.b16 %v2279, %v2278
    %v2351 = vpack.c.b16 %v2281, %v2280
    %v2352 = vpack.c.b16 %v2283, %v2282
    %v2353 = vpack.c.b16 %v2285, %v2284
    %v2354 = vpack.c.b16 %v2287, %v2286
    %v2355 = vpack.c.b16 %v2289, %v2288
    %v2356 = vpack.c.b16 %v2291, %v2290
    %v2357 = vpack.c.b16 %v2293, %v2292
    %v2358 = vpack.c.b16 %v2295, %v2294
    %v2359 = vpack.c.b16 %v2297, %v2296
    %v2360 = vpack.c.b16 %v2299, %v2298
    %v2361 = vpack.c.b16 %v2301, %v2300
    %v2362 = vpack.c.b16 %v2303, %v2302
    %v2363 = vpack.c.b16 %v2305, %v2304
    %v2364 = vpack.c.b16 %v2307, %v2306
    %v2365 = vpack.c.b16 %v2309, %v2308
    %2422 = vmatprep.subr.bf16.mxu0 0
    %2423 = vmatpush1.bf16.msra.mxu0 %v2310
    %2424 = vmatprep.subr.bf16.mxu0 0
    %2425 = vmatpush1.bf16.msra.mxu0 %v2311
    %2426 = vmatprep.subr.bf16.mxu0 0
    %2427 = vmatpush1.bf16.msra.mxu0 %v2312
    %2428 = vmatprep.subr.bf16.mxu0 0
    %2429 = vmatpush1.bf16.msra.mxu0 %v2313
    %2430 = vmatprep.subr.bf16.mxu0 0
    %2431 = vmatpush1.bf16.msra.mxu0 %v2314
    %2432 = vmatprep.subr.bf16.mxu0 0
    %2433 = vmatpush1.bf16.msra.mxu0 %v2315
    %2434 = vmatprep.subr.bf16.mxu0 0
    %2435 = vmatpush1.bf16.msra.mxu0 %v2316
    %2436 = vmatprep.subr.bf16.mxu0 0
    %2437 = vmatpush1.bf16.msra.mxu0 %v2317
    %2438 = vmatprep.subr.bf16.mxu0 0
    %2439 = vmatpush1.bf16.msra.mxu0 %v2318
    %2440 = vmatprep.subr.bf16.mxu0 0
    %2441 = vmatpush1.bf16.msra.mxu0 %v2319
    %2442 = vmatprep.subr.bf16.mxu0 0
    %2443 = vmatpush1.bf16.msra.mxu0 %v2320
    %2444 = vmatprep.subr.bf16.mxu0 0
    %2445 = vmatpush1.bf16.msra.mxu0 %v2321
    %2446 = vmatprep.subr.bf16.mxu0 0
    %2447 = vmatpush1.bf16.msra.mxu0 %v2322
    %2448 = vmatprep.subr.bf16.mxu0 0
    %2449 = vmatpush1.bf16.msra.mxu0 %v2323
    %2450 = vmatprep.subr.bf16.mxu0 0
    %2451 = vmatpush1.bf16.msra.mxu0 %v2324
    %2452 = vmatprep.subr.bf16.mxu0 0
    %2453 = vmatpush1.bf16.msra.mxu0 %v2325
    %2454 = vmatprep.mubr.bf16.mxu0 %v1881
    %2455 = vmatmul.mubr.bf16.gmra.mrb[0].mxu0 %v1866
    %v2456 = vpop.f32.mrb[0].mxu0
    %v2457 = vadd.f32 %v2084, %v2456
    %v2458 = vpop.f32.mrb[0].mxu0
    %v2459 = vpop.f32.mrb[0].mxu0
    %v2460 = vadd.f32 %v2084, %v2459
    %v2461 = vpop.f32.mrb[0].mxu0
    %2462 = vmatprep.mubr.bf16.mxu0 %v1889
    %2463 = vmatmul.mubr.bf16.gmra.mrb[0].mxu0 %v1867
    %v2464 = vpop.f32.mrb[0].mxu0
    %v2465 = vadd.f32 %v2084, %v2464
    %v2466 = vpop.f32.mrb[0].mxu0
    %v2467 = vpop.f32.mrb[0].mxu0
    %v2468 = vadd.f32 %v2084, %v2467
    %v2469 = vpop.f32.mrb[0].mxu0
    %2470 = vmatprep.mubr.bf16.mxu0 %v1892
    %2471 = vmatmul.mubr.bf16.gmra.mrb[0].mxu0 %v1868
    %v2472 = vpop.f32.mrb[0].mxu0
    %v2473 = vadd.f32 %v2084, %v2472
    %v2474 = vpop.f32.mrb[0].mxu0
    %v2475 = vpop.f32.mrb[0].mxu0
    %v2476 = vadd.f32 %v2084, %v2475
    %v2477 = vpop.f32.mrb[0].mxu0
    %2478 = vdwg.mxu0
    %2479 = vmatprep.subr.bf16.mxu0 0
    %2480 = vmatpush1.bf16.msra.mxu0 %v2326
    %2481 = vmatprep.subr.bf16.mxu0 0
    %2482 = vmatpush1.bf16.msra.mxu0 %v2327
    %2483 = vmatprep.subr.bf16.mxu0 0
    %2484 = vmatpush1.bf16.msra.mxu0 %v2328
    %2485 = vmatprep.subr.bf16.mxu0 0
    %2486 = vmatpush1.bf16.msra.mxu0 %v2329
    %2487 = vmatprep.subr.bf16.mxu0 0
    %2488 = vmatpush1.bf16.msra.mxu0 %v2330
    %2489 = vmatprep.subr.bf16.mxu0 0
    %2490 = vmatpush1.bf16.msra.mxu0 %v2331
    %2491 = vmatprep.subr.bf16.mxu0 0
    %2492 = vmatpush1.bf16.msra.mxu0 %v2332
    %2493 = vmatprep.subr.bf16.mxu0 0
    %2494 = vmatpush1.bf16.msra.mxu0 %v2333
    %2495 = vmatprep.subr.bf16.mxu0 0
    %2496 = vmatpush1.bf16.msra.mxu0 %v2334
    %2497 = vmatprep.subr.bf16.mxu0 0
    %2498 = vmatpush1.bf16.msra.mxu0 %v2335
    %2499 = vmatprep.subr.bf16.mxu0 0
    %2500 = vmatpush1.bf16.msra.mxu0 %v2336
    %2501 = vmatprep.subr.bf16.mxu0 0
    %2502 = vmatpush1.bf16.msra.mxu0 %v2337
    %2503 = vmatprep.subr.bf16.mxu0 0
    %2504 = vmatpush1.bf16.msra.mxu0 %v2338
    %2505 = vmatprep.subr.bf16.mxu0 0
    %2506 = vmatpush1.bf16.msra.mxu0 %v2339
    %2507 = vmatprep.subr.bf16.mxu0 0
    %2508 = vmatpush1.bf16.msra.mxu0 %v2340
    %2509 = vmatprep.subr.bf16.mxu0 0
    %2510 = vmatpush1.bf16.msra.mxu0 %v2341
    %2511 = vmatprep.mubr.bf16.mxu0 %v1913
    %2512 = vmatmul.mubr.bf16.gmra.mrb[0].mxu0 %v1901
    %v2513 = vpop.f32.mrb[0].mxu0
    %v2514 = vadd.f32 %v2457, %v2513
    %v2515 = vpop.f32.mrb[0].mxu0
    %v2516 = vpop.f32.mrb[0].mxu0
    %v2517 = vadd.f32 %v2460, %v2516
    %v2518 = vpop.f32.mrb[0].mxu0
    %2519 = vmatprep.mubr.bf16.mxu0 %v1917
    %2520 = vmatmul.mubr.bf16.gmra.mrb[0].mxu0 %v1903
    %v2521 = vpop.f32.mrb[0].mxu0
    %v2522 = vadd.f32 %v2465, %v2521
    %v2523 = vpop.f32.mrb[0].mxu0
    %v2524 = vpop.f32.mrb[0].mxu0
    %v2525 = vadd.f32 %v2468, %v2524
    %v2526 = vpop.f32.mrb[0].mxu0
    %2527 = vmatprep.mubr.bf16.mxu0 %v1922
    %2528 = vmatmul.mubr.bf16.gmra.mrb[0].mxu0 %v1902
    %v2529 = vpop.f32.mrb[0].mxu0
    %v2530 = vadd.f32 %v2473, %v2529
    %v2531 = vpop.f32.mrb[0].mxu0
    %v2532 = vpop.f32.mrb[0].mxu0
    %v2533 = vadd.f32 %v2476, %v2532
    %v2534 = vpop.f32.mrb[0].mxu0
    %2535 = vdwg.mxu0
    %2536 = vmatprep.subr.bf16.mxu0 0
    %2537 = vmatpush1.bf16.msra.mxu0 %v2342
    %2538 = vmatprep.subr.bf16.mxu0 0
    %2539 = vmatpush1.bf16.msra.mxu0 %v2343
    %2540 = vmatprep.subr.bf16.mxu0 0
    %2541 = vmatpush1.bf16.msra.mxu0 %v2344
    %2542 = vmatprep.subr.bf16.mxu0 0
    %2543 = vmatpush1.bf16.msra.mxu0 %v2345
    %2544 = vmatprep.subr.bf16.mxu0 0
    %2545 = vmatpush1.bf16.msra.mxu0 %v2346
    %2546 = vmatprep.subr.bf16.mxu0 0
    %2547 = vmatpush1.bf16.msra.mxu0 %v2347
    %2548 = vmatprep.subr.bf16.mxu0 0
    %2549 = vmatpush1.bf16.msra.mxu0 %v2348
    %2550 = vmatprep.subr.bf16.mxu0 0
    %2551 = vmatpush1.bf16.msra.mxu0 %v2349
    %2552 = vmatprep.subr.bf16.mxu0 0
    %2553 = vmatpush1.bf16.msra.mxu0 %v2350
    %2554 = vmatprep.subr.bf16.mxu0 0
    %2555 = vmatpush1.bf16.msra.mxu0 %v2351
    %2556 = vmatprep.subr.bf16.mxu0 0
    %2557 = vmatpush1.bf16.msra.mxu0 %v2352
    %2558 = vmatprep.subr.bf16.mxu0 0
    %2559 = vmatpush1.bf16.msra.mxu0 %v2353
    %2560 = vmatprep.subr.bf16.mxu0 0
    %2561 = vmatpush1.bf16.msra.mxu0 %v2354
    %2562 = vmatprep.subr.bf16.mxu0 0
    %2563 = vmatpush1.bf16.msra.mxu0 %v2355
    %2564 = vmatprep.subr.bf16.mxu0 0
    %2565 = vmatpush1.bf16.msra.mxu0 %v2356
    %2566 = vmatprep.subr.bf16.mxu0 0
    %2567 = vmatpush1.bf16.msra.mxu0 %v2357
    %2568 = vmatprep.mubr.bf16.mxu0 %v1943
    %2569 = vmatmul.mubr.bf16.gmra.mrb[0].mxu0 %v1929
    %v2570 = vpop.f32.mrb[0].mxu0
    %v2571 = vadd.f32 %v2514, %v2570
    %v2572 = vpop.f32.mrb[0].mxu0
    %v2573 = vpop.f32.mrb[0].mxu0
    %v2574 = vadd.f32 %v2517, %v2573
    %v2575 = vpop.f32.mrb[0].mxu0
    %2576 = vmatprep.mubr.bf16.mxu0 %v1947
    %2577 = vmatmul.mubr.bf16.gmra.mrb[0].mxu0 %v1931
    %v2578 = vpop.f32.mrb[0].mxu0
    %v2579 = vadd.f32 %v2522, %v2578
    %v2580 = vpop.f32.mrb[0].mxu0
    %v2581 = vpop.f32.mrb[0].mxu0
    %v2582 = vadd.f32 %v2525, %v2581
    %v2583 = vpop.f32.mrb[0].mxu0
    %2584 = vmatprep.mubr.bf16.mxu0 %v1953
    %2585 = vmatmul.mubr.bf16.gmra.mrb[0].mxu0 %v1933
    %v2586 = vpop.f32.mrb[0].mxu0
    %v2587 = vadd.f32 %v2530, %v2586
    %v2588 = vpop.f32.mrb[0].mxu0
    %v2589 = vpop.f32.mrb[0].mxu0
    %v2590 = vadd.f32 %v2533, %v2589
    %v2591 = vpop.f32.mrb[0].mxu0
    %2592 = vdwg.mxu0
    %2593 = vmatprep.subr.bf16.mxu0 0
    %2594 = vmatpush1.bf16.msra.mxu0 %v2358
    %2595 = vmatprep.subr.bf16.mxu0 0
    %2596 = vmatpush1.bf16.msra.mxu0 %v2359
    %2597 = vmatprep.subr.bf16.mxu0 0
    %2598 = vmatpush1.bf16.msra.mxu0 %v2360
    %2599 = vmatprep.subr.bf16.mxu0 0
    %2600 = vmatpush1.bf16.msra.mxu0 %v2361
    %2601 = vmatprep.subr.bf16.mxu0 0
    %2602 = vmatpush1.bf16.msra.mxu0 %v2362
    %2603 = vmatprep.subr.bf16.mxu0 0
    %2604 = vmatpush1.bf16.msra.mxu0 %v2363
    %2605 = vmatprep.subr.bf16.mxu0 0
    %2606 = vmatpush1.bf16.msra.mxu0 %v2364
    %2607 = vmatprep.subr.bf16.mxu0 0
    %2608 = vmatpush1.bf16.msra.mxu0 %v2365
    %2609 = vmatprep.subr.bf16.mxu0 0
    %2610 = vmatpush1.bf16.msra.mxu0 0
    %2611 = vmatprep.subr.bf16.mxu0 0
    %2612 = vmatpush1.bf16.msra.mxu0 0
    %2613 = vmatprep.subr.bf16.mxu0 0
    %2614 = vmatpush1.bf16.msra.mxu0 0
    %2615 = vmatprep.subr.bf16.mxu0 0
    %2616 = vmatpush1.bf16.msra.mxu0 0
    %2617 = vmatprep.subr.bf16.mxu0 0
    %2618 = vmatpush1.bf16.msra.mxu0 0
    %2619 = vmatprep.subr.bf16.mxu0 0
    %2620 = vmatpush1.bf16.msra.mxu0 0
    %2621 = vmatprep.subr.bf16.mxu0 0
    %2622 = vmatpush1.bf16.msra.mxu0 0
    %2623 = vmatprep.subr.bf16.mxu0 0
    %2624 = vmatpush1.bf16.msra.mxu0 0
    %2625 = vmatprep.mubr.bf16.mxu0 0
    %2626 = vmatmul.mubr.bf16.gmra.mrb[0].mxu0 %v1959
    %v2627 = vpop.f32.mrb[0].mxu0
    %v2628 = vadd.f32 %v2571, %v2627
    %v2629 = vpop.f32.mrb[0].mxu0
    %v2630 = vpop.f32.mrb[0].mxu0
    %v2631 = vadd.f32 %v2574, %v2630
    %v2632 = vpop.f32.mrb[0].mxu0
    %2633 = vmatprep.mubr.bf16.mxu0 0
    %2634 = vmatmul.mubr.bf16.gmra.mrb[0].mxu0 %v1961
    %v2635 = vpop.f32.mrb[0].mxu0
    %v2636 = vadd.f32 %v2579, %v2635
    %v2637 = vpop.f32.mrb[0].mxu0
    %v2638 = vpop.f32.mrb[0].mxu0
    %v2639 = vadd.f32 %v2582, %v2638
    %v2640 = vpop.f32.mrb[0].mxu0
    %2641 = vmatprep.mubr.bf16.mxu0 0
    %2642 = vmatmul.mubr.bf16.gmra.mrb[0].mxu0 %v1963
    %v2643 = vpop.f32.mrb[0].mxu0
    %v2644 = vadd.f32 %v2587, %v2643
    %v2645 = vpop.f32.mrb[0].mxu0
    %v2646 = vpop.f32.mrb[0].mxu0
    %v2647 = vadd.f32 %v2590, %v2646
    %v2648 = vpop.f32.mrb[0].mxu0
    %2649 = vdwg.mxu0
    %v2650 = vmax.f32 %v2628, 0.0
    %v2651 = vmax.f32 %v2631, 0.0
    %v2652 = vmax.f32 %v2636, 0.0
    %v2653 = vmax.f32 %v2639, 0.0
    %v2654 = vmax.f32 %v2644, 0.0
    %v2655 = vmax.f32 %v2647, 0.0
    %v2656 = vld [vmem:[%s1] sm:$0x3]
    %vm2657 = vcmask 375808
    %v2659 = vsel %vm2657, %v2656, 0
    %v2662 = vsel %vm178, %v2655, 0
    %2664 = vmatprep.subr.mxu0 0.0
    %2665 = vmatpush1.msra.mxu0 %v2650
    %2666 = vmatprep.subr.mxu0 0.0
    %2667 = vmatpush1.msra.mxu0 %v2651
    %2668 = vmatprep.subr.mxu0 0.0
    %2669 = vmatpush1.msra.mxu0 %v2652
    %2670 = vmatprep.subr.mxu0 0.0
    %2671 = vmatpush1.msra.mxu0 %v2653
    %2672 = vmatprep.subr.mxu0 0.0
    %2673 = vmatpush1.msra.mxu0 %v2654
    %2674 = vmatprep.subr.mxu0 0.0
    %2675 = vmatpush1.msra.mxu0 %v2662
    %2676 = vmatprep.subr.mxu0 0.0
    %2677 = vmatpush1.msra.mxu0 0.0
    %2678 = vmatprep.subr.mxu0 0.0
    %2679 = vmatpush1.msra.mxu0 0.0
    %2680 = vmatprep.subr.mxu0 0.0
    %2681 = vmatpush1.msra.mxu0 0.0
    %2682 = vmatprep.subr.mxu0 0.0
    %2683 = vmatpush1.msra.mxu0 0.0
    %2684 = vmatprep.subr.mxu0 0.0
    %2685 = vmatpush1.msra.mxu0 0.0
    %2686 = vmatprep.subr.mxu0 0.0
    %2687 = vmatpush1.msra.mxu0 0.0
    %2688 = vmatprep.subr.mxu0 0.0
    %2689 = vmatpush1.msra.mxu0 0.0
    %2690 = vmatprep.subr.mxu0 0.0
    %2691 = vmatpush1.msra.mxu0 0.0
    %2692 = vmatprep.subr.mxu0 0.0
    %2693 = vmatpush1.msra.mxu0 0.0
    %2694 = vmatprep.subr.mxu0 0.0
    %2695 = vmatpush1.msra.mxu0 0.0
    %2696 = vmatprep.subr.mxu0 0.0
    %2697 = vmatpush1.msra.mxu0 0.0
    %2698 = vmatprep.subr.mxu0 0.0
    %2699 = vmatpush1.msra.mxu0 0.0
    %2700 = vmatprep.subr.mxu0 0.0
    %2701 = vmatpush1.msra.mxu0 0.0
    %2702 = vmatprep.subr.mxu0 0.0
    %2703 = vmatpush1.msra.mxu0 0.0
    %2704 = vmatprep.subr.mxu0 0.0
    %2705 = vmatpush1.msra.mxu0 0.0
    %2706 = vmatprep.subr.mxu0 0.0
    %2707 = vmatpush1.msra.mxu0 0.0
    %2708 = vmatprep.subr.mxu0 0.0
    %2709 = vmatpush1.msra.mxu0 0.0
    %2710 = vmatprep.subr.mxu0 0.0
    %2711 = vmatpush1.msra.mxu0 0.0
    %2712 = vmatprep.subr.mxu0 0.0
    %2713 = vmatpush1.msra.mxu0 0.0
    %2714 = vmatprep.subr.mxu0 0.0
    %2715 = vmatpush1.msra.mxu0 0.0
    %2716 = vmatprep.subr.mxu0 0.0
    %2717 = vmatpush1.msra.mxu0 0.0
    %2718 = vmatprep.subr.mxu0 0.0
    %2719 = vmatpush1.msra.mxu0 0.0
    %2720 = vmatprep.subr.mxu0 0.0
    %2721 = vmatpush1.msra.mxu0 0.0
    %2722 = vmatprep.subr.mxu0 0.0
    %2723 = vmatpush1.msra.mxu0 0.0
    %2724 = vmatprep.subr.mxu0 0.0
    %2725 = vmatpush1.msra.mxu0 0.0
    %2726 = vmatprep.subr.mxu0 0.0
    %2727 = vmatpush1.msra.mxu0 0.0
    %2728 = vmatprep.mubr.f32.mxu0 0.0
    %2729 = vmatmul.mubr.f32.gmra.mrb[0].mxu0 %v2659
    %v2730 = vpop.f32.mrb[0].mxu0
    %v2731 = vadd.f32 0.0, %v2730
    %v2732 = vpop.f32.mrb[0].mxu0
    %2733 = vdwg.mxu0
    %v2734 = vpack.c.bf16 %v2731, %v2731
    %v2735 = vld [vmem:[%s8] sm:$0xf]
    %v2736 = vld [vmem:[%s8 + $0x4] sm:$0xf]
    %v2737 = vld [vmem:[%s8 + $0x8] sm:$0xf]
    %v2738 = vld [vmem:[%s8 + $0xc] sm:$0xf]
    %v2739 = vld [vmem:[%s8 + $0x10] sm:$0xf]
    %v2740 = vld [vmem:[%s8 + $0x14] sm:$0xf]
    %v2741 = vld [vmem:[%s8 + $0x18] sm:$0xf]
    %v2742 = vld [vmem:[%s8 + $0x1c] sm:$0xf]
    %v2743 = vld [vmem:[%s8 + $0x20] sm:$0xf]
    %v2744 = vld [vmem:[%s8 + $0x24] sm:$0xf]
    %v2745 = vld [vmem:[%s8 + $0x28] sm:$0xf]
    %v2746 = vld [vmem:[%s8 + $0x2c] sm:$0xf]
    %v2747 = vld [vmem:[%s8 + $0x30] sm:$0xf]
    %v2748 = vld [vmem:[%s8 + $0x34] sm:$0xf]
    %v2749 = vld [vmem:[%s8 + $0x38] sm:$0xf]
    %v2750 = vld [vmem:[%s8 + $0x3c] sm:$0xf]
    %v2751 = vld [vmem:[%s9] sm:$0x1]
    %v2753 = vlaneseq
    %v2754 = vshrl.u32 %v2753, 7
    %v2755 = vsub.s32 0, %v2754
    %v2756 = vrot.slane %v2751, %v2755
    %v2774 = vunpack.c.l.b16 %v2735
    %v2775 = vunpack.c.l.b16 %v2736
    %v2776 = vunpack.c.l.b16 %v2737
    %v2777 = vunpack.c.l.b16 %v2738
    %v2778 = vunpack.c.l.b16 %v2739
    %v2779 = vunpack.c.l.b16 %v2740
    %v2780 = vunpack.c.l.b16 %v2741
    %v2781 = vunpack.c.l.b16 %v2742
    %v2782 = vunpack.c.l.b16 %v2743
    %v2783 = vunpack.c.l.b16 %v2744
    %v2784 = vunpack.c.l.b16 %v2745
    %v2785 = vunpack.c.l.b16 %v2746
    %v2786 = vunpack.c.l.b16 %v2747
    %v2787 = vunpack.c.l.b16 %v2748
    %v2788 = vunpack.c.l.b16 %v2749
    %v2789 = vunpack.c.l.b16 %v2750
    %v2790 = vpack.c.b16 %v2775, %v2774
    %v2791 = vpack.c.b16 %v2777, %v2776
    %v2792 = vpack.c.b16 %v2779, %v2778
    %v2793 = vpack.c.b16 %v2781, %v2780
    %v2794 = vpack.c.b16 %v2783, %v2782
    %v2795 = vpack.c.b16 %v2785, %v2784
    %v2796 = vpack.c.b16 %v2787, %v2786
    %v2797 = vpack.c.b16 %v2789, %v2788
    %2806 = vmatprep.subr.bf16.mxu0 0
    %2807 = vmatpush1.bf16.msra.mxu0 %v2790
    %2808 = vmatprep.subr.bf16.mxu0 0
    %2809 = vmatpush1.bf16.msra.mxu0 %v2791
    %2810 = vmatprep.subr.bf16.mxu0 0
    %2811 = vmatpush1.bf16.msra.mxu0 %v2792
    %2812 = vmatprep.subr.bf16.mxu0 0
    %2813 = vmatpush1.bf16.msra.mxu0 %v2793
    %2814 = vmatprep.subr.bf16.mxu0 0
    %2815 = vmatpush1.bf16.msra.mxu0 %v2794
    %2816 = vmatprep.subr.bf16.mxu0 0
    %2817 = vmatpush1.bf16.msra.mxu0 %v2795
    %2818 = vmatprep.subr.bf16.mxu0 0
    %2819 = vmatpush1.bf16.msra.mxu0 %v2796
    %2820 = vmatprep.subr.bf16.mxu0 0
    %2821 = vmatpush1.bf16.msra.mxu0 %v2797
    %2822 = vmatprep.subr.bf16.mxu0 0
    %2823 = vmatpush1.bf16.msra.mxu0 0
    %2824 = vmatprep.subr.bf16.mxu0 0
    %2825 = vmatpush1.bf16.msra.mxu0 0
    %2826 = vmatprep.subr.bf16.mxu0 0
    %2827 = vmatpush1.bf16.msra.mxu0 0
    %2828 = vmatprep.subr.bf16.mxu0 0
    %2829 = vmatpush1.bf16.msra.mxu0 0
    %2830 = vmatprep.subr.bf16.mxu0 0
    %2831 = vmatpush1.bf16.msra.mxu0 0
    %2832 = vmatprep.subr.bf16.mxu0 0
    %2833 = vmatpush1.bf16.msra.mxu0 0
    %2834 = vmatprep.subr.bf16.mxu0 0
    %2835 = vmatpush1.bf16.msra.mxu0 0
    %2836 = vmatprep.subr.bf16.mxu0 0
    %2837 = vmatpush1.bf16.msra.mxu0 0
    %2838 = vmatprep.mubr.bf16.mxu0 0
    %2839 = vmatmul.mubr.bf16.gmra.mrb[0].mxu0 %v2734
    %v2840 = vpop.f32.mrb[0].mxu0
    %v2841 = vadd.f32 %v2756, %v2840
    %v2842 = vpop.f32.mrb[0].mxu0
    %v2843 = vpop.f32.mrb[0].mxu0
    %v2844 = vpop.f32.mrb[0].mxu0
    %2845 = vdwg.mxu0
    %v2846 = vmax.f32 %v2841, 0.0
    %v2847 = vpack.c.bf16 %v2846, %v2846
    %v2848 = vld [vmem:[#allocation6] sm:$0xf]
    %v2849 = vld [vmem:[#allocation6 + $0x4] sm:$0xf]
    %v2850 = vld [vmem:[#allocation6 + $0x8] sm:$0xf]
    %v2851 = vld [vmem:[#allocation6 + $0xc] sm:$0xf]
    %v2852 = vld [vmem:[#allocation6 + $0x10] sm:$0xf]
    %v2853 = vld [vmem:[#allocation6 + $0x14] sm:$0xf]
    %v2854 = vld [vmem:[#allocation6 + $0x18] sm:$0xf]
    %v2855 = vld [vmem:[#allocation6 + $0x1c] sm:$0xf]
    %v2856 = vld [vmem:[%s11] sm:$0x1]
    %v2858 = vlaneseq
    %v2859 = vshrl.u32 %v2858, 7
    %v2860 = vsub.s32 0, %v2859
    %v2861 = vrot.slane %v2856, %v2860
    %v2871 = vunpack.c.l.b16 %v2848
    %v2872 = vunpack.c.l.b16 %v2849
    %v2873 = vunpack.c.l.b16 %v2850
    %v2874 = vunpack.c.l.b16 %v2851
    %v2875 = vunpack.c.l.b16 %v2852
    %v2876 = vunpack.c.l.b16 %v2853
    %v2877 = vunpack.c.l.b16 %v2854
    %v2878 = vunpack.c.l.b16 %v2855
    %v2879 = vpack.c.b16 %v2872, %v2871
    %v2880 = vpack.c.b16 %v2874, %v2873
    %v2881 = vpack.c.b16 %v2876, %v2875
    %v2882 = vpack.c.b16 %v2878, %v2877
    %vm2887 = vcmask 523264
    %v2889 = vsel %vm2887, %v2847, 0
    %2891 = vmatprep.subr.bf16.mxu0 0
    %2892 = vmatpush1.bf16.msra.mxu0 %v2879
    %2893 = vmatprep.subr.bf16.mxu0 0
    %2894 = vmatpush1.bf16.msra.mxu0 %v2880
    %2895 = vmatprep.subr.bf16.mxu0 0
    %2896 = vmatpush1.bf16.msra.mxu0 %v2881
    %2897 = vmatprep.subr.bf16.mxu0 0
    %2898 = vmatpush1.bf16.msra.mxu0 %v2882
    %2899 = vmatprep.subr.bf16.mxu0 0
    %2900 = vmatpush1.bf16.msra.mxu0 0
    %2901 = vmatprep.subr.bf16.mxu0 0
    %2902 = vmatpush1.bf16.msra.mxu0 0
    %2903 = vmatprep.subr.bf16.mxu0 0
    %2904 = vmatpush1.bf16.msra.mxu0 0
    %2905 = vmatprep.subr.bf16.mxu0 0
    %2906 = vmatpush1.bf16.msra.mxu0 0
    %2907 = vmatprep.subr.bf16.mxu0 0
    %2908 = vmatpush1.bf16.msra.mxu0 0
    %2909 = vmatprep.subr.bf16.mxu0 0
    %2910 = vmatpush1.bf16.msra.mxu0 0
    %2911 = vmatprep.subr.bf16.mxu0 0
    %2912 = vmatpush1.bf16.msra.mxu0 0
    %2913 = vmatprep.subr.bf16.mxu0 0
    %2914 = vmatpush1.bf16.msra.mxu0 0
    %2915 = vmatprep.subr.bf16.mxu0 0
    %2916 = vmatpush1.bf16.msra.mxu0 0
    %2917 = vmatprep.subr.bf16.mxu0 0
    %2918 = vmatpush1.bf16.msra.mxu0 0
    %2919 = vmatprep.subr.bf16.mxu0 0
    %2920 = vmatpush1.bf16.msra.mxu0 0
    %2921 = vmatprep.subr.bf16.mxu0 0
    %2922 = vmatpush1.bf16.msra.mxu0 0
    %2923 = vmatprep.mubr.bf16.mxu0 0
    %2924 = vmatmul.mubr.bf16.gmra.mrb[0].mxu0 %v2889
    %v2925 = vpop.f32.mrb[0].mxu0
    %v2926 = vadd.f32 %v2861, %v2925
    %v2927 = vpop.f32.mrb[0].mxu0
    %v2928 = vpop.f32.mrb[0].mxu0
    %v2929 = vpop.f32.mrb[0].mxu0
    %2930 = vdwg.mxu0
    %v2931 = vmax.f32 %v2926, 0.0
    %v2932 = vpack.c.bf16 %v2931, %v2931
    %v2933 = vld [vmem:[#allocation7] sm:$0xf]
    %v2934 = vld [vmem:[#allocation7 + $0x4] sm:$0xf]
    %v2935 = vld [vmem:[#allocation7 + $0x8] sm:$0xf]
    %v2936 = vld [vmem:[#allocation7 + $0xc] sm:$0xf]
    %v2937 = vld [vmem:[#allocation7 + $0x10] sm:$0xf]
    %v2938 = vld [vmem:[#allocation7 + $0x14] sm:$0xf]
    %v2939 = vld [vmem:[#allocation7 + $0x18] sm:$0xf]
    %v2940 = vld [vmem:[#allocation7 + $0x1c] sm:$0xf]
    %v2941 = vld [vmem:[#allocation7 + $0x20] sm:$0xf]
    %v2942 = vld [vmem:[#allocation7 + $0x24] sm:$0xf]
    %v2943 = vld [vmem:[#allocation7 + $0x28] sm:$0xf]
    %v2944 = vld [vmem:[#allocation7 + $0x2c] sm:$0xf]
    %v2945 = vld [vmem:[#allocation7 + $0x30] sm:$0xf]
    %v2946 = vld [vmem:[#allocation7 + $0x34] sm:$0xf]
    %v2947 = vld [vmem:[#allocation7 + $0x38] sm:$0xf]
    %v2948 = vld [vmem:[#allocation7 + $0x3c] sm:$0xf]
    %v2949 = vld [vmem:[%s13] sm:$0x1]
    %v2951 = vlaneseq
    %v2952 = vshrl.u32 %v2951, 7
    %v2953 = vsub.s32 0, %v2952
    %v2954 = vrot.slane %v2949, %v2953
    %v2972 = vunpack.c.l.b16 %v2933
    %v2973 = vunpack.c.l.b16 %v2934
    %v2974 = vunpack.c.l.b16 %v2935
    %v2975 = vunpack.c.l.b16 %v2936
    %v2976 = vunpack.c.l.b16 %v2937
    %v2977 = vunpack.c.l.b16 %v2938
    %v2978 = vunpack.c.l.b16 %v2939
    %v2979 = vunpack.c.l.b16 %v2940
    %v2980 = vunpack.c.l.b16 %v2941
    %v2981 = vunpack.c.l.b16 %v2942
    %v2982 = vunpack.c.l.b16 %v2943
    %v2983 = vunpack.c.l.b16 %v2944
    %v2984 = vunpack.c.l.b16 %v2945
    %v2985 = vunpack.c.l.b16 %v2946
    %v2986 = vunpack.c.l.b16 %v2947
    %v2987 = vunpack.c.l.b16 %v2948
    %v2988 = vpack.c.b16 %v2973, %v2972
    %v2989 = vpack.c.b16 %v2975, %v2974
    %v2990 = vpack.c.b16 %v2977, %v2976
    %v2991 = vpack.c.b16 %v2979, %v2978
    %v2992 = vpack.c.b16 %v2981, %v2980
    %v2993 = vpack.c.b16 %v2983, %v2982
    %v2994 = vpack.c.b16 %v2985, %v2984
    %v2995 = vpack.c.b16 %v2987, %v2986
    %3004 = vmatprep.subr.bf16.mxu0 0
    %3005 = vmatpush1.bf16.msra.mxu0 %v2988
    %3006 = vmatprep.subr.bf16.mxu0 0
    %3007 = vmatpush1.bf16.msra.mxu0 %v2989
    %3008 = vmatprep.subr.bf16.mxu0 0
    %3009 = vmatpush1.bf16.msra.mxu0 %v2990
    %3010 = vmatprep.subr.bf16.mxu0 0
    %3011 = vmatpush1.bf16.msra.mxu0 %v2991
    %3012 = vmatprep.subr.bf16.mxu0 0
    %3013 = vmatpush1.bf16.msra.mxu0 %v2992
    %3014 = vmatprep.subr.bf16.mxu0 0
    %3015 = vmatpush1.bf16.msra.mxu0 %v2993
    %3016 = vmatprep.subr.bf16.mxu0 0
    %3017 = vmatpush1.bf16.msra.mxu0 %v2994
    %3018 = vmatprep.subr.bf16.mxu0 0
    %3019 = vmatpush1.bf16.msra.mxu0 %v2995
    %3020 = vmatprep.subr.bf16.mxu0 0
    %3021 = vmatpush1.bf16.msra.mxu0 0
    %3022 = vmatprep.subr.bf16.mxu0 0
    %3023 = vmatpush1.bf16.msra.mxu0 0
    %3024 = vmatprep.subr.bf16.mxu0 0
    %3025 = vmatpush1.bf16.msra.mxu0 0
    %3026 = vmatprep.subr.bf16.mxu0 0
    %3027 = vmatpush1.bf16.msra.mxu0 0
    %3028 = vmatprep.subr.bf16.mxu0 0
    %3029 = vmatpush1.bf16.msra.mxu0 0
    %3030 = vmatprep.subr.bf16.mxu0 0
    %3031 = vmatpush1.bf16.msra.mxu0 0
    %3032 = vmatprep.subr.bf16.mxu0 0
    %3033 = vmatpush1.bf16.msra.mxu0 0
    %3034 = vmatprep.subr.bf16.mxu0 0
    %3035 = vmatpush1.bf16.msra.mxu0 0
    %3036 = vmatprep.mubr.bf16.mxu0 0
    %3037 = vmatmul.mubr.bf16.gmra.mrb[0].mxu0 %v2932
    %v3038 = vpop.f32.mrb[0].mxu0
    %v3039 = vadd.f32 %v2954, %v3038
    %v3040 = vpop.f32.mrb[0].mxu0
    %v3041 = vpop.f32.mrb[0].mxu0
    %v3042 = vpop.f32.mrb[0].mxu0
    %3043 = vdwg.mxu0
    %3044 = vst [vmem:[%s14] sm:$0x3] %v3039
    // Predicated region
    $region74: #{cnn1d_forward.1} parent=1 // pred_check
      _
    $region75: #{cnn1d_forward.1} parent=1 // pred_check_branch
      %3046 = sbr.rel (0) target = $region77
    $region76: #{cnn1d_forward.1} parent=1 // pred_region
      _
    $region77: #{cnn1d_forward.1} parent=1 // pred_fallthru
      _
    // Predicated region
    $region78: #{cnn1d_forward.1} parent=1 // pred_check
      _
    $region79: #{cnn1d_forward.1} parent=1 // pred_check_branch
      %3048 = sbr.rel (0) target = $region81
    $region80: #{cnn1d_forward.1} parent=1 // pred_region
      _
    $region81: #{cnn1d_forward.1} parent=1 // pred_fallthru
      _
    %3049 = vsyncpa [#allocation3], 1
    %3050 = vsyncpa [#allocation5], 1
    %3051 = vsyncpa [#allocation8], 1

</llo_original>
